<compile_context>
chip_gen: v6e
topology: v6e:2x2x1
jax: 0.10.0
libtpu: 0.0.40
codegen_flags: <defaults>
</compile_context>

<pallas_src>
import functools
import math

import jax
import jax.numpy as jnp
from jax import lax
from jax.experimental import pallas as pl
from jax.experimental.pallas import tpu as pltpu

NEG_INF = -1e30  # large finite negative; avoids -inf - -inf NaN corner cases


def _vmem_limit_bytes():
    """VMEM budget with headroom for compiler scratch / double-buffers."""
    try:
        cap = int(pltpu.get_tpu_info().vmem_capacity_bytes)
    except Exception:
        cap = 64 * 1024 * 1024  # conservative (v7x-sized) fallback
    return int(min(max(cap - 16 * 1024 * 1024, 32 * 1024 * 1024),
                   96 * 1024 * 1024))


# ---------------------------------------------------------------------------
# Kernel A: fused QKV projection (x @ Wqkv + b), head-major bf16 outputs,
#           q pre-scaled by 1/sqrt(head_dim).
# ---------------------------------------------------------------------------
def qkv_proj_kernel(x_ref, w_ref, b_ref, q_ref, k_ref, v_ref, *, scale):
    H, tt, hd = q_ref.shape
    C = x_ref.shape[1]

    x = x_ref[...].astype(jnp.bfloat16)                               # (tt, C)
    acc = jnp.dot(x, w_ref[...], preferred_element_type=jnp.float32)
    acc = acc + b_ref[...]                                            # (tt, 3C) f32

    def to_heads(m):  # (tt, H*hd) bf16 -> (H, tt, hd)
        return m.reshape(tt, H, hd).transpose(1, 0, 2)

    # Head-split done ONCE here (amortized over all kv steps in Kernel B).
    q_ref[...] = to_heads((acc[:, :C] * scale).astype(q_ref.dtype))
    k_ref[...] = to_heads(acc[:, C:2 * C].astype(k_ref.dtype))
    v_ref[...] = to_heads(acc[:, 2 * C:].astype(v_ref.dtype))


def _qkv_proj(x, w_attn, b_attn, *, n_head, scale, block_t, vmem_limit):
    B, T, C = x.shape
    hd = C // n_head
    tt = min(block_t, T)
    assert T % tt == 0

    w_bf = w_attn.astype(jnp.bfloat16)                   # (C, 3C) bf16 for the MXU
    b2 = b_attn.reshape(1, 3 * C).astype(jnp.float32)

    out_sh = jax.ShapeDtypeStruct((B, n_head, T, hd), jnp.bfloat16)
    kern = functools.partial(qkv_proj_kernel, scale=scale)
    return pl.pallas_call(
        kern,
        out_shape=(out_sh, out_sh, out_sh),
        grid=(B, T // tt),
        in_specs=[
            pl.BlockSpec((None, tt, C), lambda b, i: (b, i, 0)),
            # Constant-index weights. TODO(synk): on v7x at very large C,
            # pipeline_mode=pl.Buffered(1) would avoid double-buffering them.
            pl.BlockSpec((C, 3 * C), lambda b, i: (0, 0)),
            pl.BlockSpec((1, 3 * C), lambda b, i: (0, 0)),
        ],
        out_specs=(
            pl.BlockSpec((None, n_head, tt, hd), lambda b, i: (b, 0, i, 0)),
            pl.BlockSpec((None, n_head, tt, hd), lambda b, i: (b, 0, i, 0)),
            pl.BlockSpec((None, n_head, tt, hd), lambda b, i: (b, 0, i, 0)),
        ),
        compiler_params=pltpu.CompilerParams(
            dimension_semantics=("parallel", "parallel"),
            vmem_limit_bytes=vmem_limit,
        ),
    )(x, w_bf, b2)


# ---------------------------------------------------------------------------
# Kernel B: flash attention (online softmax over kv tiles, per-head loop)
#           with the c_proj matmul + bias fused into the finalize step.
# ---------------------------------------------------------------------------
def flash_attn_kernel(q_ref, k_ref, v_ref, wp_ref, bp_ref, o_ref,
                      m_scr, l_scr, acc_scr):
    H, bq, hd = q_ref.shape
    bk = k_ref.shape[1]
    C = wp_ref.shape[2]

    qi = pl.program_id(1)
    ki = pl.program_id(2)
    q_start = qi * bq
    k_start = ki * bk

    # Tile classification against the causal diagonal.
    visible = k_start <= q_start + (bq - 1)            # any k <= q in the tile
    full = k_start + (bk - 1) <= q_start               # whole tile visible

    @pl.when(ki == 0)
    def _init():
        m_scr[...] = jnp.full_like(m_scr, NEG_INF)
        l_scr[...] = jnp.zeros_like(l_scr)
        acc_scr[...] = jnp.zeros_like(acc_scr)

    def _update(masked):
        if masked:
            q_pos = q_start + lax.broadcasted_iota(jnp.int32, (bq, bk), 0)
            k_pos = k_start + lax.broadcasted_iota(jnp.int32, (bq, bk), 1)
            mask = k_pos <= q_pos
        # Per-head (bq, bk) tiles keep the online-softmax chain in registers
        # instead of streaming a (H, bq, bk) f32 tensor through VMEM.
        for h in range(H):
            qh = q_ref[h]                               # (bq, hd) bf16 (pre-scaled)
            kh = k_ref[h]                               # (bk, hd) bf16
            vh = v_ref[h]                               # (bk, hd) bf16
            s = lax.dot_general(qh, kh, (((1,), (1,)), ((), ())),
                                preferred_element_type=jnp.float32)   # (bq, bk)
            if masked:
                s = jnp.where(mask, s, NEG_INF)
            m_prev = m_scr[h]                                         # (bq, 1)
            m_new = jnp.maximum(m_prev, jnp.max(s, axis=-1, keepdims=True))
            alpha = jnp.exp(m_prev - m_new)
            p = jnp.exp(s - m_new)                                    # (bq, bk) f32
            l_scr[h] = alpha * l_scr[h] + jnp.sum(p, axis=-1, keepdims=True)
            acc_scr[h] = alpha * acc_scr[h] + jnp.dot(
                p.astype(vh.dtype), vh, preferred_element_type=jnp.float32)
            m_scr[h] = m_new

    @pl.when(full)
    def _below_diag():          # fully visible tile: no mask work at all
        _update(masked=False)

    @pl.when(jnp.logical_and(visible, jnp.logical_not(full)))
    def _on_diag():             # diagonal-crossing tile: build + apply mask
        _update(masked=True)

    # NOTE: correctness of the -1e30 mask / skipped upper-triangle tiles relies
    # on the kv axis being the innermost, increasing, "arbitrary" grid axis.
    @pl.when(ki == pl.num_programs(2) - 1)
    def _finalize():
        out = jnp.broadcast_to(bp_ref[...], (bq, C)).astype(jnp.float32)
        for h in range(H):
            # Exact reciprocal: runs once per q tile, negligible cost.
            y_h = acc_scr[h] * pl.reciprocal(l_scr[h], approx=False)  # (bq, hd)
            out = out + jnp.dot(y_h.astype(jnp.bfloat16), wp_ref[h],
                                preferred_element_type=jnp.float32)
        o_ref[...] = out.astype(o_ref.dtype)


def causal_self_attention(x, w_attn, b_attn, w_proj, b_proj, *, n_head,
                          block_q=256, block_k=256, block_t=512):
    """x:(B,T,C)  w_attn:(C,3C)  b_attn:(3C,)  w_proj:(C,C)  b_proj:(C,)"""
    B, T, C = x.shape
    assert C % n_head == 0
    hd = C // n_head
    scale = 1.0 / math.sqrt(hd)

    tq = min(block_q, T)
    tk = min(block_k, T)
    tt = min(block_t, T)
    assert T % tq == 0 and T % tk == 0 and T % tt == 0
    # bf16 q/k/v: minimum tile is (16, 128) -> guard against tiny overrides.
    assert tq % 16 == 0 and tk % 16 == 0 and tt % 16 == 0

    vmem_limit = _vmem_limit_bytes()

    q, k, v = _qkv_proj(x, w_attn, b_attn, n_head=n_head, scale=scale,
                        block_t=tt, vmem_limit=vmem_limit)

    # c_proj weight pre-split per head: rows h*hd..(h+1)*hd of (C, C).
    wp_bf = w_proj.reshape(n_head, hd, C).astype(jnp.bfloat16)
    bp2 = b_proj.reshape(1, C).astype(jnp.float32)

    def kv_index(b, qi, ki):
        # Clamp to the last causally-visible kv tile for this q tile so the
        # fully-masked steps reuse the previous block -> their DMA is elided
        # (the compute for those steps is skipped via pl.when in the kernel).
        last_needed = (qi * tq + tq - 1) // tk
        return (b, 0, jnp.minimum(ki, last_needed), 0)

    return pl.pallas_call(
        flash_attn_kernel,
        out_shape=jax.ShapeDtypeStruct((B, T, C), x.dtype),
        grid=(B, T // tq, T // tk),   # kv axis MUST stay innermost/"arbitrary"
        in_specs=[
            pl.BlockSpec((None, n_head, tq, hd), lambda b, qi, ki: (b, 0, qi, 0)),
            pl.BlockSpec((None, n_head, tk, hd), kv_index),
            pl.BlockSpec((None, n_head, tk, hd), kv_index),
            # Constant-index weights. TODO(synk): pl.Buffered(1) option on v7x.
            pl.BlockSpec((n_head, hd, C), lambda b, qi, ki: (0, 0, 0)),
            pl.BlockSpec((1, C), lambda b, qi, ki: (0, 0)),
        ],
        out_specs=pl.BlockSpec((None, tq, C), lambda b, qi, ki: (b, qi, 0)),
        scratch_shapes=[
            pltpu.VMEM((n_head, tq, 1), jnp.float32),    # running max m
            pltpu.VMEM((n_head, tq, 1), jnp.float32),    # running denom l
            pltpu.VMEM((n_head, tq, hd), jnp.float32),   # running output acc
        ],
        compiler_params=pltpu.CompilerParams(
            dimension_semantics=("parallel", "parallel", "arbitrary"),
            vmem_limit_bytes=vmem_limit,
        ),
    )(q, k, v, wp_bf, bp2)


# ---------------------------------------------------------------------------
# Pure-JAX f32 reference (mirrors the PyTorch forward)
# ---------------------------------------------------------------------------
def ref_causal_self_attention(x, w_attn, b_attn, w_proj, b_proj, n_head):
    B, T, C = x.shape
    hd = C // n_head
    qkv = x @ w_attn + b_attn
    q, k, v = jnp.split(qkv, 3, axis=-1)
    q = q.reshape(B, T, n_head, hd).transpose(0, 2, 1, 3)
    k = k.reshape(B, T, n_head, hd).transpose(0, 2, 1, 3)
    v = v.reshape(B, T, n_head, hd).transpose(0, 2, 1, 3)
    att = jnp.einsum('bhqd,bhkd->bhqk', q, k) * (1.0 / math.sqrt(hd))
    mask = jnp.tril(jnp.ones((T, T), dtype=bool))
    att = jnp.where(mask, att, -jnp.inf)
    att = jax.nn.softmax(att, axis=-1)
    y = jnp.einsum('bhqk,bhkd->bhqd', att, v)
    y = y.transpose(0, 2, 1, 3).reshape(B, T, C)
    return y @ w_proj + b_proj


# ---------------------------------------------------------------------------
if __name__ == "__main__":
    # Small GPT-2-like config (C lane-dense = 128). Tiles of 16/32 (multiples
    # of 16) give 4x4 kv/q tile grids, exercising the causal tile skip, the
    # clamped K/V DMA, and both masked/unmasked compute branches.
    B, T, C, n_head = 2, 64, 128, 4

    key = jax.random.PRNGKey(0)
    kx, kw1, kb1, kw2, kb2 = jax.random.split(key, 5)
    x = jax.random.normal(kx, (B, T, C), jnp.float32)
    w_attn = jax.random.normal(kw1, (C, 3 * C), jnp.float32) / math.sqrt(C)
    b_attn = 0.1 * jax.random.normal(kb1, (3 * C,), jnp.float32)
    w_proj = jax.random.normal(kw2, (C, C), jnp.float32) / math.sqrt(C)
    b_proj = 0.1 * jax.random.normal(kb2, (C,), jnp.float32)

    out = causal_self_attention(x, w_attn, b_attn, w_proj, b_proj,
                                n_head=n_head, block_q=16, block_k=16,
                                block_t=32)
    out = jax.block_until_ready(out)

    ref = ref_causal_self_attention(x, w_attn, b_attn, w_proj, b_proj, n_head)
    assert out.shape == (B, T, C)
    max_err = float(jnp.max(jnp.abs(out - ref)))
    assert jnp.allclose(out, ref, rtol=5e-2, atol=5e-2), max_err

    print("KERNEL_OK")
</pallas_src>

<mosaic_0001>
module attributes {stable_mosaic.version = 11 : i64} {
  func.func @qkv_proj_kernel(%arg0: i32, %arg1: i32, %arg2: memref<1x32x128xf32, #tpu.memory_space<vmem>>, %arg3: memref<128x384xbf16, #tpu.memory_space<vmem>>, %arg4: memref<1x384xf32, #tpu.memory_space<vmem>>, %arg5: memref<1x4x32x32xbf16, #tpu.memory_space<vmem>>, %arg6: memref<1x4x32x32xbf16, #tpu.memory_space<vmem>>, %arg7: memref<1x4x32x32xbf16, #tpu.memory_space<vmem>>) attributes {dimension_semantics = [#tpu.dimension_semantics<parallel>, #tpu.dimension_semantics<parallel>], iteration_bounds = array<i64: 2, 2>, scalar_prefetch = 0 : i64, scratch_operands = 0 : i64, tpu.core_type = #tpu.core_type<tc>, window_params = [{transform_indices = @transform_0, window_bounds = array<i64: 1, 32, 128>}, {pipeline_mode = #tpu.pipeline_mode<synchronous>, transform_indices = @transform_1, window_bounds = array<i64: 128, 384>}, {pipeline_mode = #tpu.pipeline_mode<synchronous>, transform_indices = @transform_2, window_bounds = array<i64: 1, 384>}, {transform_indices = @transform_3, window_bounds = array<i64: 1, 4, 32, 32>}, {transform_indices = @transform_4, window_bounds = array<i64: 1, 4, 32, 32>}, {transform_indices = @transform_5, window_bounds = array<i64: 1, 4, 32, 32>}]} {
    %c0 = arith.constant 0 : index
    %c0_0 = arith.constant 0 : index
    %c0_1 = arith.constant 0 : index
    %0 = vector.load %arg2[%c0, %c0_0, %c0_1] : memref<1x32x128xf32, #tpu.memory_space<vmem>>, vector<1x32x128xf32>
    %1 = vector.shape_cast %0 : vector<1x32x128xf32> to vector<32x128xf32>
    %2 = arith.truncf %1 : vector<32x128xf32> to vector<32x128xbf16>
    %c0_2 = arith.constant 0 : index
    %c0_3 = arith.constant 0 : index
    %3 = vector.load %arg3[%c0_2, %c0_3] : memref<128x384xbf16, #tpu.memory_space<vmem>>, vector<128x384xbf16>
    %cst = arith.constant dense<0.000000e+00> : vector<32x384xf32>
    %4 = tpu.matmul %2, %3, %cst {dimension_numbers = #tpu.dot_dimension_numbers<[1], [0], [0], [1], [0, 0, 1, 1], [], []>} : vector<32x128xbf16>, vector<128x384xbf16>, vector<32x384xf32> -> vector<32x384xf32>
    %c0_4 = arith.constant 0 : index
    %c0_5 = arith.constant 0 : index
    %5 = vector.load %arg4[%c0_4, %c0_5] : memref<1x384xf32, #tpu.memory_space<vmem>>, vector<1x384xf32>
    %6 = vector.broadcast %5 : vector<1x384xf32> to vector<32x384xf32>
    %7 = arith.addf %4, %6 : vector<32x384xf32>
    %8 = vector.extract_strided_slice %7 {offsets = [0, 0], sizes = [32, 128], strides = [1, 1]} : vector<32x384xf32> to vector<32x128xf32>
    %cst_6 = arith.constant 0.176776692 : f32
    %9 = vector.broadcast %cst_6 : f32 to vector<32x128xf32>
    %10 = arith.mulf %8, %9 : vector<32x128xf32>
    %11 = arith.truncf %10 : vector<32x128xf32> to vector<32x128xbf16>
    %12 = vector.shape_cast %11 : vector<32x128xbf16> to vector<32x4x32xbf16>
    %13 = tpu.transpose %12, [1, 0, 2] : vector<32x4x32xbf16> -> vector<4x32x32xbf16>
    %c0_7 = arith.constant 0 : index
    %c0_8 = arith.constant 0 : index
    %c0_9 = arith.constant 0 : index
    %c0_10 = arith.constant 0 : index
    %14 = vector.load %arg5[%c0_7, %c0_8, %c0_9, %c0_10] : memref<1x4x32x32xbf16, #tpu.memory_space<vmem>>, vector<1x4x32x32xbf16>
    %15 = vector.shape_cast %14 : vector<1x4x32x32xbf16> to vector<4x32x32xbf16>
    %16 = vector.shape_cast %13 : vector<4x32x32xbf16> to vector<1x4x32x32xbf16>
    tpu.vector_store %arg5[%c0_7, %c0_8, %c0_9, %c0_10], %16 {strides = array<i32>} : memref<1x4x32x32xbf16, #tpu.memory_space<vmem>>, vector<1x4x32x32xbf16>,
    %17 = vector.extract_strided_slice %7 {offsets = [0, 128], sizes = [32, 128], strides = [1, 1]} : vector<32x384xf32> to vector<32x128xf32>
    %18 = arith.truncf %17 : vector<32x128xf32> to vector<32x128xbf16>
    %19 = vector.shape_cast %18 : vector<32x128xbf16> to vector<32x4x32xbf16>
    %20 = tpu.transpose %19, [1, 0, 2] : vector<32x4x32xbf16> -> vector<4x32x32xbf16>
    %c0_11 = arith.constant 0 : index
    %c0_12 = arith.constant 0 : index
    %c0_13 = arith.constant 0 : index
    %c0_14 = arith.constant 0 : index
    %21 = vector.load %arg6[%c0_11, %c0_12, %c0_13, %c0_14] : memref<1x4x32x32xbf16, #tpu.memory_space<vmem>>, vector<1x4x32x32xbf16>
    %22 = vector.shape_cast %21 : vector<1x4x32x32xbf16> to vector<4x32x32xbf16>
    %23 = vector.shape_cast %20 : vector<4x32x32xbf16> to vector<1x4x32x32xbf16>
    tpu.vector_store %arg6[%c0_11, %c0_12, %c0_13, %c0_14], %23 {strides = array<i32>} : memref<1x4x32x32xbf16, #tpu.memory_space<vmem>>, vector<1x4x32x32xbf16>,
    %24 = vector.extract_strided_slice %7 {offsets = [0, 256], sizes = [32, 128], strides = [1, 1]} : vector<32x384xf32> to vector<32x128xf32>
    %25 = arith.truncf %24 : vector<32x128xf32> to vector<32x128xbf16>
    %26 = vector.shape_cast %25 : vector<32x128xbf16> to vector<32x4x32xbf16>
    %27 = tpu.transpose %26, [1, 0, 2] : vector<32x4x32xbf16> -> vector<4x32x32xbf16>
    %c0_15 = arith.constant 0 : index
    %c0_16 = arith.constant 0 : index
    %c0_17 = arith.constant 0 : index
    %c0_18 = arith.constant 0 : index
    %28 = vector.load %arg7[%c0_15, %c0_16, %c0_17, %c0_18] : memref<1x4x32x32xbf16, #tpu.memory_space<vmem>>, vector<1x4x32x32xbf16>
    %29 = vector.shape_cast %28 : vector<1x4x32x32xbf16> to vector<4x32x32xbf16>
    %30 = vector.shape_cast %27 : vector<4x32x32xbf16> to vector<1x4x32x32xbf16>
    tpu.vector_store %arg7[%c0_15, %c0_16, %c0_17, %c0_18], %30 {strides = array<i32>} : memref<1x4x32x32xbf16, #tpu.memory_space<vmem>>, vector<1x4x32x32xbf16>,
    return
  }
  func.func @transform_0(%arg0: i32, %arg1: i32) -> (i32, i32, i32) {
    %c0_i32 = arith.constant 0 : i32
    %c0_i32_0 = arith.constant 0 : i32
    return %arg0, %arg1, %c0_i32 : i32, i32, i32
  }
  func.func @transform_1(%arg0: i32, %arg1: i32) -> (i32, i32) {
    %c0_i32 = arith.constant 0 : i32
    %c0_i32_0 = arith.constant 0 : i32
    %c0_i32_1 = arith.constant 0 : i32
    return %c0_i32, %c0_i32_0 : i32, i32
  }
  func.func @transform_2(%arg0: i32, %arg1: i32) -> (i32, i32) {
    %c0_i32 = arith.constant 0 : i32
    %c0_i32_0 = arith.constant 0 : i32
    %c0_i32_1 = arith.constant 0 : i32
    return %c0_i32, %c0_i32_0 : i32, i32
  }
  func.func @transform_3(%arg0: i32, %arg1: i32) -> (i32, i32, i32, i32) {
    %c0_i32 = arith.constant 0 : i32
    %c0_i32_0 = arith.constant 0 : i32
    %c0_i32_1 = arith.constant 0 : i32
    return %arg0, %c0_i32, %arg1, %c0_i32_0 : i32, i32, i32, i32
  }
  func.func @transform_4(%arg0: i32, %arg1: i32) -> (i32, i32, i32, i32) {
    %c0_i32 = arith.constant 0 : i32
    %c0_i32_0 = arith.constant 0 : i32
    %c0_i32_1 = arith.constant 0 : i32
    return %arg0, %c0_i32, %arg1, %c0_i32_0 : i32, i32, i32, i32
  }
  func.func @transform_5(%arg0: i32, %arg1: i32) -> (i32, i32, i32, i32) {
    %c0_i32 = arith.constant 0 : i32
    %c0_i32_0 = arith.constant 0 : i32
    %c0_i32_1 = arith.constant 0 : i32
    return %arg0, %c0_i32, %arg1, %c0_i32_0 : i32, i32, i32, i32
  }
}

</mosaic_0001>

<llo_original>
// kernel: tpu_custom_call.1
$region0: #{tpu_custom_call.1}
  #allocation0 [shape = 'u32[]', space=smem, size = 0x4, offset = 0x4, fixed_abs, tag = 'smem constant byte address 0x4 - core index']
  #allocation1 [shape = 'u32[144,128]{1,0:T(1,128)}', space=vmem, size = 0x12000, scoped, tag = 'internal scratch']
  %s0 = inlined_call_operand.hbm [shape: f32[2,64,128], index: 0, kind: input, shape index: {}]
  %s1 = inlined_call_operand.hbm [shape: bf16[128,384], index: 1, kind: input, shape index: {}]
  %s2 = inlined_call_operand.vmem [shape: f32[1,384], index: 2, kind: input, shape index: {}]
  %s3 = inlined_call_operand.vmem [shape: bf16[2,4,64,32], index: 3, kind: output, shape index: {0}]
  %s4 = inlined_call_operand.vmem [shape: bf16[2,4,64,32], index: 4, kind: output, shape index: {1}]
  %s5 = inlined_call_operand.vmem [shape: bf16[2,4,64,32], index: 5, kind: output, shape index: {2}]
  %6 = xla_tuple %s3, %s4, %s5
  %s7 = sld [smem:[#allocation0]]
  $region180: #{tpu_custom_call.1} parent=0
    _
  %s9 = ssub.s32 1, %s7
  %s10 = scalar_select 0, %s9, %s7
  $region1: #{tpu_custom_call.1} parent=0
    #allocation2 [shape = 'u8[32768]{0}', space=vmem, size = 0x8000, scoped, tag = 'input window, operand 0']
    #allocation3 [shape = 's32[2]{0}', space=sflag, size = 0x8, scoped, tag = 'scoped memory for tpu_custom_call.1']
    #allocation4 [shape = 'u8[98304]{0}', space=vmem, size = 0x18000, scoped, tag = 'input window, operand 1, single buffered']
    #allocation5 [shape = 's32[1]{0}', space=sflag, size = 0x4, scoped, tag = 'scoped memory for tpu_custom_call.1']
    #allocation6 [shape = 'u8[65536]{0}', space=vmem, size = 0x10000, scoped, tag = 'output window, operand 0']
    #allocation7 [shape = 'u8[65536]{0}', space=vmem, size = 0x10000, scoped, tag = 'output window, operand 1']
    #allocation8 [shape = 'u8[65536]{0}', space=vmem, size = 0x10000, scoped, tag = 'output window, operand 2']
    %11 = vsyncpa [#allocation3], 0
    %s12 = scalar_lea.sflag [#allocation3], 1
    %13 = vsyncpa %s12, 0
    %14 = vsyncpa [#allocation5], 0
    loop: start=0, step=1, limit=6
    $region2: #{tpu_custom_call.1} parent=1 // loop_pre_header
      _
    $region3: #{tpu_custom_call.1} parent=1 // loop_header
      %s16 = sphi 0, %s20
      %p17 = scmp.ge.s32.totalorder %s16, 6
      %s23 = sphi 0, %s35
      %s24 = sphi 0, %s31
      %s25 = sphi 0, %s23
      %s26 = sphi 0, %s24
      %s27 = sphi 0, %s25
      %s28 = sphi 0, %s26
      %s40 = sphi 0, %s42
      %s43 = sphi 0, %s40
      %s44 = sphi 0, %s43
      %s60 = sphi 0, %s44
      %s64 = sphi 0, %s64
      %s66 = sphi 0, %s64
      %s67 = sphi 0, %s66
      %s81 = sphi 0, %s67
      %s85 = sphi 0, %s85
      %s87 = sphi 0, %s85
      %s88 = sphi 0, %s87
      %s102 = sphi 0, %s88
      %s110 = sphi 0, %s112
      %s113 = sphi 0, %s110
      %s114 = sphi 0, %s113
      %s130 = sphi 0, %s114
      %s138 = sphi 0, %s140
      %s141 = sphi 0, %s138
      %s142 = sphi 0, %s141
      %s158 = sphi 0, %s142
      %s166 = sphi 0, %s168
      %s169 = sphi 0, %s166
      %s170 = sphi 0, %s169
      %s186 = sphi 0, %s170
    $region4: #{tpu_custom_call.1} parent=1 // loop_header_branch
      %19 = sbr.rel (%p17) target = $region8
    $region5: #{tpu_custom_call.1} parent=1 // loop_body
      %s21 = ssub.s32 %s16, 1
      %s22 = ssub.s32 %s16, 2
      %s29 = sadd.s32 1, %s24
      %p30 = scmp.ge.s32.totalorder %s29, 2
      %s31 = scalar_select %p30, 0, %s29
      %s32 = sadd.s32 1, %s23
      %s33 = scalar_select %p30, %s32, %s23
      %p34 = scmp.ge.s32.totalorder %s33, 2
      %s35 = scalar_select %p34, 0, %s33
      %s36 = ssub.s32 %s23, %s35
      %s37 = ssub.s32 %s24, %s31
      %s38 = sor.u32 %s36, %s37
      %p39 = scmp.eq.s32.totalorder %s38, 0
      %s41 = sadd.s32 %s40, 1
      %s42 = scalar_select %p39, %s40, %s41
      %p45 = pneg %p39
      %p46 = scmp.eq.s32.totalorder %s16, 3
      %p47 = por %p45, %p46
      %p48 = scmp.ne.s32.totalorder %s40, %s43
      %p49 = scmp.eq.s32.totalorder %s16, 0
      %p50 = por %p48, %p49
      %p51 = scmp.ne.s32.totalorder %s40, %s43
      %p52 = scmp.eq.s32.totalorder %s21, 3
      %p53 = por %p51, %p52
      %p54 = scmp.ne.s32.totalorder %s43, %s44
      %p55 = scmp.eq.s32.totalorder %s21, 0
      %p56 = por %p54, %p55
      %p57 = scmp.ne.s32.totalorder %s43, %s44
      %p58 = scmp.eq.s32.totalorder %s22, 3
      %p59 = por %p57, %p58
      %p61 = scmp.ne.s32.totalorder %s44, %s60
      %p62 = scmp.eq.s32.totalorder %s22, 0
      %p63 = por %p61, %p62
      %s65 = sadd.s32 %s64, 1
      %p68 = scmp.eq.s32.totalorder %s16, 3
      %p69 = scmp.ne.s32.totalorder %s64, %s66
      %p70 = scmp.eq.s32.totalorder %s16, 0
      %p71 = por %p69, %p70
      %p72 = scmp.ne.s32.totalorder %s64, %s66
      %p73 = scmp.eq.s32.totalorder %s21, 3
      %p74 = por %p72, %p73
      %p75 = scmp.ne.s32.totalorder %s66, %s67
      %p76 = scmp.eq.s32.totalorder %s21, 0
      %p77 = por %p75, %p76
      %p78 = scmp.ne.s32.totalorder %s66, %s67
      %p79 = scmp.eq.s32.totalorder %s22, 3
      %p80 = por %p78, %p79
      %p82 = scmp.ne.s32.totalorder %s67, %s81
      %p83 = scmp.eq.s32.totalorder %s22, 0
      %p84 = por %p82, %p83
      %s86 = sadd.s32 %s85, 1
      %p89 = scmp.eq.s32.totalorder %s16, 3
      %p90 = scmp.ne.s32.totalorder %s85, %s87
      %p91 = scmp.eq.s32.totalorder %s16, 0
      %p92 = por %p90, %p91
      %p93 = scmp.ne.s32.totalorder %s85, %s87
      %p94 = scmp.eq.s32.totalorder %s21, 3
      %p95 = por %p93, %p94
      %p96 = scmp.ne.s32.totalorder %s87, %s88
      %p97 = scmp.eq.s32.totalorder %s21, 0
      %p98 = por %p96, %p97
      %p99 = scmp.ne.s32.totalorder %s87, %s88
      %p100 = scmp.eq.s32.totalorder %s22, 3
      %p101 = por %p99, %p100
      %p103 = scmp.ne.s32.totalorder %s88, %s102
      %p104 = scmp.eq.s32.totalorder %s22, 0
      %p105 = por %p103, %p104
      %s106 = ssub.s32 %s23, %s35
      %s107 = ssub.s32 %s24, %s31
      %s108 = sor.u32 %s106, %s107
      %p109 = scmp.eq.s32.totalorder %s108, 0
      %s111 = sadd.s32 %s110, 1
      %s112 = scalar_select %p109, %s110, %s111
      %p115 = pneg %p109
      %p116 = scmp.eq.s32.totalorder %s16, 3
      %p117 = por %p115, %p116
      %p118 = scmp.ne.s32.totalorder %s110, %s113
      %p119 = scmp.eq.s32.totalorder %s16, 0
      %p120 = por %p118, %p119
      %p121 = scmp.ne.s32.totalorder %s110, %s113
      %p122 = scmp.eq.s32.totalorder %s21, 3
      %p123 = por %p121, %p122
      %p124 = scmp.ne.s32.totalorder %s113, %s114
      %p125 = scmp.eq.s32.totalorder %s21, 0
      %p126 = por %p124, %p125
      %p127 = scmp.ne.s32.totalorder %s113, %s114
      %p128 = scmp.eq.s32.totalorder %s22, 3
      %p129 = por %p127, %p128
      %p131 = scmp.ne.s32.totalorder %s114, %s130
      %p132 = scmp.eq.s32.totalorder %s22, 0
      %p133 = por %p131, %p132
      %s134 = ssub.s32 %s23, %s35
      %s135 = ssub.s32 %s24, %s31
      %s136 = sor.u32 %s134, %s135
      %p137 = scmp.eq.s32.totalorder %s136, 0
      %s139 = sadd.s32 %s138, 1
      %s140 = scalar_select %p137, %s138, %s139
      %p143 = pneg %p137
      %p144 = scmp.eq.s32.totalorder %s16, 3
      %p145 = por %p143, %p144
      %p146 = scmp.ne.s32.totalorder %s138, %s141
      %p147 = scmp.eq.s32.totalorder %s16, 0
      %p148 = por %p146, %p147
      %p149 = scmp.ne.s32.totalorder %s138, %s141
      %p150 = scmp.eq.s32.totalorder %s21, 3
      %p151 = por %p149, %p150
      %p152 = scmp.ne.s32.totalorder %s141, %s142
      %p153 = scmp.eq.s32.totalorder %s21, 0
      %p154 = por %p152, %p153
      %p155 = scmp.ne.s32.totalorder %s141, %s142
      %p156 = scmp.eq.s32.totalorder %s22, 3
      %p157 = por %p155, %p156
      %p159 = scmp.ne.s32.totalorder %s142, %s158
      %p160 = scmp.eq.s32.totalorder %s22, 0
      %p161 = por %p159, %p160
      %s162 = ssub.s32 %s23, %s35
      %s163 = ssub.s32 %s24, %s31
      %s164 = sor.u32 %s162, %s163
      %p165 = scmp.eq.s32.totalorder %s164, 0
      %s167 = sadd.s32 %s166, 1
      %s168 = scalar_select %p165, %s166, %s167
      %p171 = pneg %p165
      %p172 = scmp.eq.s32.totalorder %s16, 3
      %p173 = por %p171, %p172
      %p174 = scmp.ne.s32.totalorder %s166, %s169
      %p175 = scmp.eq.s32.totalorder %s16, 0
      %p176 = por %p174, %p175
      %p177 = scmp.ne.s32.totalorder %s166, %s169
      %p178 = scmp.eq.s32.totalorder %s21, 3
      %p179 = por %p177, %p178
      %p180 = scmp.ne.s32.totalorder %s169, %s170
      %p181 = scmp.eq.s32.totalorder %s21, 0
      %p182 = por %p180, %p181
      %p183 = scmp.ne.s32.totalorder %s169, %s170
      %p184 = scmp.eq.s32.totalorder %s22, 3
      %p185 = por %p183, %p184
      %p187 = scmp.ne.s32.totalorder %s170, %s186
      %p188 = scmp.eq.s32.totalorder %s22, 0
      %p189 = por %p187, %p188
      %p190 = scmp.le.s32.totalorder 1, %s16
      %p191 = scmp.lt.s32.totalorder %s16, 5
      %p192 = pnand %p190, %p191
      %p193 = pneg %p192
      // Predicated region
      $region9: #{tpu_custom_call.1} parent=5 // pred_check
        _
      $region10: #{tpu_custom_call.1} parent=5 // pred_check_branch
        %195 = sbr.rel (%p192) target = $region12
      $region11: #{tpu_custom_call.1} parent=5 // pred_region
        %s196 = ssub.s32 %s16, 1
        // Predicated region
        $region13: #{tpu_custom_call.1} parent=11 // pred_check
          %p197 = pneg %p77
        $region14: #{tpu_custom_call.1} parent=11 // pred_check_branch
          %199 = sbr.rel (%p197) target = $region16
        $region15: #{tpu_custom_call.1} parent=11 // pred_region
          %s201 = ssub.s32 3072, 3072
          %202 = vsyncadd [#allocation5], %s201
          %s203 = sshll.u32 [#allocation4], 4
          %s204 = int_to_ptr.vmem [resolvable:$true] %s203
          %209 = dma.hbm_to_vmem [thread:$0]  %s1, 3072, %s204, [#allocation5], 192, 192, 12
        $region16: #{tpu_custom_call.1} parent=11 // pred_fallthru
          _
        // Predicated region
        $region17: #{tpu_custom_call.1} parent=11 // pred_check
          %p210 = pneg %p98
        $region18: #{tpu_custom_call.1} parent=11 // pred_check_branch
          %212 = sbr.rel (%p210) target = $region20
        $region19: #{tpu_custom_call.1} parent=11 // pred_region
          _
        $region20: #{tpu_custom_call.1} parent=11 // pred_fallthru
          _
      $region12: #{tpu_custom_call.1} parent=5 // pred_fallthru
        _
      %p213 = scmp.lt.s32.totalorder %s16, 4
      // Predicated region
      $region21: #{tpu_custom_call.1} parent=5 // pred_check
        %p214 = pneg %p213
      $region22: #{tpu_custom_call.1} parent=5 // pred_check_branch
        %216 = sbr.rel (%p214) target = $region24
      $region23: #{tpu_custom_call.1} parent=5 // pred_region
        // Predicated region
        $region25: #{tpu_custom_call.1} parent=23 // pred_check
          %p217 = pneg %p50
        $region26: #{tpu_custom_call.1} parent=23 // pred_check_branch
          %219 = sbr.rel (%p217) target = $region28
        $region27: #{tpu_custom_call.1} parent=23 // pred_region
          %s220 = sand.u32 %s40, 1
          %s221 = scalar_lea.sflag [#allocation3], %s220
          %s222 = sand.u32 %s40, 1
          %s223 = smul.addr %s222, 32
          %s224 = scalar_lea.vmem [#allocation2], %s223
          %s225 = smul.u32 4, %s24
          %s227 = ssub.s32 512, 512
          %228 = vsyncadd %s221, %s227
          %s229 = smul.addr %s23, 8
          %s230 = sadd.s32 %s225, %s229
          %s231 = smul.addr %s230, 128
          %s232 = scalar_lea.hbm %s0, %s231
          %s233 = sshll.u32 %s224, 4
          %s234 = int_to_ptr.vmem [resolvable:$true] %s233
          %239 = dma.hbm_to_vmem [thread:$0]  %s232, 512, %s234, %s221, 128, 128, 8
        $region28: #{tpu_custom_call.1} parent=23 // pred_fallthru
          _
      $region24: #{tpu_custom_call.1} parent=5 // pred_fallthru
        _
      %p240 = scmp.le.s32.totalorder 1, %s16
      %p241 = scmp.lt.s32.totalorder %s16, 5
      %p242 = pnand %p240, %p241
      %p243 = pneg %p242
      // Predicated region
      $region29: #{tpu_custom_call.1} parent=5 // pred_check
        _
      $region30: #{tpu_custom_call.1} parent=5 // pred_check_branch
        %245 = sbr.rel (%p242) target = $region32
      $region31: #{tpu_custom_call.1} parent=5 // pred_region
        %s246 = ssub.s32 %s16, 1
        %s247 = sand.u32 %s43, 1
        %s248 = scalar_lea.sflag [#allocation3], %s247
        %s249 = sand.u32 %s43, 1
        %s250 = smul.addr %s249, 32
        %s251 = scalar_lea.vmem [#allocation2], %s250
        // Predicated region
        $region33: #{tpu_custom_call.1} parent=31 // pred_check
          %p252 = pneg %p56
        $region34: #{tpu_custom_call.1} parent=31 // pred_check_branch
          %254 = sbr.rel (%p252) target = $region36
        $region35: #{tpu_custom_call.1} parent=31 // pred_region
          %255 = dma.done %s248, 512
        $region36: #{tpu_custom_call.1} parent=31 // pred_fallthru
          _
        // Predicated region
        $region37: #{tpu_custom_call.1} parent=31 // pred_check
          %p256 = pneg %p77
        $region38: #{tpu_custom_call.1} parent=31 // pred_check_branch
          %258 = sbr.rel (%p256) target = $region40
        $region39: #{tpu_custom_call.1} parent=31 // pred_region
          %259 = dma.done [#allocation5], 3072
        $region40: #{tpu_custom_call.1} parent=31 // pred_fallthru
          _
        %s260 = sand.u32 %s43, 1
        %s261 = scalar_lea.sflag [#allocation3], %s260
        %s262 = sand.u32 %s43, 1
        %s263 = smul.addr %s262, 32
        %s264 = scalar_lea.vmem [#allocation2], %s263
        %p265 = pneg %p56
        %p266 = pneg %p53
        %p267 = pneg %p77
        %p268 = pneg %p74
        %p269 = pneg %p98
        %p270 = pneg %p95
        %p271 = pneg %p126
        %p272 = pneg %p123
        %s273 = sand.u32 %s113, 1
        %s274 = sand.u32 %s113, 1
        %s275 = smul.addr %s274, 64
        %s276 = scalar_lea.vmem [#allocation6], %s275
        %p277 = pneg %p154
        %p278 = pneg %p151
        %s279 = sand.u32 %s141, 1
        %s280 = sand.u32 %s141, 1
        %s281 = smul.addr %s280, 64
        %s282 = scalar_lea.vmem [#allocation7], %s281
        %p283 = pneg %p182
        %p284 = pneg %p179
        %s285 = sand.u32 %s169, 1
        %s286 = sand.u32 %s169, 1
        %s287 = smul.addr %s286, 64
        %s288 = scalar_lea.vmem [#allocation8], %s287
        %s289 = smul.u32 4, %s26
        %s290 = smul.u32 4, %s26
        %s291 = smul.u32 4, %s26
        %s292 = smul.u32 4, %s26
        %v294 = vld [vmem:[%s251] sm:$0xff]
        %v295 = vld [vmem:[%s251 + $0x8] sm:$0xff]
        %v296 = vld [vmem:[%s251 + $0x10] sm:$0xff]
        %v297 = vld [vmem:[%s251 + $0x18] sm:$0xff]
        %v298 = vpack.c.bf16 %v295, %v294
        %v299 = vpack.c.bf16 %v297, %v296
        %v300 = vld [vmem:[#allocation4] sm:$0xff]
        %v301 = vld [vmem:[#allocation4 + $0x8] sm:$0xf]
        %v302 = vld [vmem:[#allocation4 + $0xc] sm:$0xff]
        %v303 = vld [vmem:[#allocation4 + $0x14] sm:$0xf]
        %v304 = vld [vmem:[#allocation4 + $0x18] sm:$0xff]
        %v305 = vld [vmem:[#allocation4 + $0x20] sm:$0xf]
        %v306 = vld [vmem:[#allocation4 + $0x24] sm:$0xff]
        %v307 = vld [vmem:[#allocation4 + $0x2c] sm:$0xf]
        %v308 = vld [vmem:[#allocation4 + $0x30] sm:$0xff]
        %v309 = vld [vmem:[#allocation4 + $0x38] sm:$0xf]
        %v310 = vld [vmem:[#allocation4 + $0x3c] sm:$0xff]
        %v311 = vld [vmem:[#allocation4 + $0x44] sm:$0xf]
        %v312 = vld [vmem:[#allocation4 + $0x48] sm:$0xff]
        %v313 = vld [vmem:[#allocation4 + $0x50] sm:$0xf]
        %v314 = vld [vmem:[#allocation4 + $0x54] sm:$0xff]
        %v315 = vld [vmem:[#allocation4 + $0x5c] sm:$0xf]
        %v316 = vld [vmem:[#allocation4 + $0x60] sm:$0xff]
        %v317 = vld [vmem:[#allocation4 + $0x68] sm:$0xf]
        %v318 = vld [vmem:[#allocation4 + $0x6c] sm:$0xff]
        %v319 = vld [vmem:[#allocation4 + $0x74] sm:$0xf]
        %v320 = vld [vmem:[#allocation4 + $0x78] sm:$0xff]
        %v321 = vld [vmem:[#allocation4 + $0x80] sm:$0xf]
        %v322 = vld [vmem:[#allocation4 + $0x84] sm:$0xff]
        %v323 = vld [vmem:[#allocation4 + $0x8c] sm:$0xf]
        %v324 = vld [vmem:[#allocation4 + $0x90] sm:$0xff]
        %v325 = vld [vmem:[#allocation4 + $0x98] sm:$0xf]
        %v326 = vld [vmem:[#allocation4 + $0x9c] sm:$0xff]
        %v327 = vld [vmem:[#allocation4 + $0xa4] sm:$0xf]
        %v328 = vld [vmem:[#allocation4 + $0xa8] sm:$0xff]
        %v329 = vld [vmem:[#allocation4 + $0xb0] sm:$0xf]
        %v330 = vld [vmem:[#allocation4 + $0xb4] sm:$0xff]
        %v331 = vld [vmem:[#allocation4 + $0xbc] sm:$0xf]
        %v332 = vld [vmem:[%s2] sm:$0x7]
        %v334 = vlaneseq
        %v335 = vshrl.u32 %v334, 7
        %v336 = vsub.s32 0, %v335
        %v337 = vrot.slane %v332, %v336
        %v338 = vlaneseq
        %v339 = vshrl.u32 %v338, 7
        %v340 = vsub.s32 1, %v339
        %v341 = vrot.slane %v332, %v340
        %v342 = vlaneseq
        %v343 = vshrl.u32 %v342, 7
        %v344 = vsub.s32 2, %v343
        %v345 = vrot.slane %v332, %v344
        %v381 = vunpack.c.l.b16 %v300
        %v382 = vunpack.c.h.b16 %v300
        %v383 = vunpack.c.l.b16 %v301
        %v384 = vunpack.c.l.b16 %v302
        %v385 = vunpack.c.h.b16 %v302
        %v386 = vunpack.c.l.b16 %v303
        %v387 = vunpack.c.l.b16 %v304
        %v388 = vunpack.c.h.b16 %v304
        %v389 = vunpack.c.l.b16 %v305
        %v390 = vunpack.c.l.b16 %v306
        %v391 = vunpack.c.h.b16 %v306
        %v392 = vunpack.c.l.b16 %v307
        %v393 = vunpack.c.l.b16 %v308
        %v394 = vunpack.c.h.b16 %v308
        %v395 = vunpack.c.l.b16 %v309
        %v396 = vunpack.c.l.b16 %v310
        %v397 = vunpack.c.h.b16 %v310
        %v398 = vunpack.c.l.b16 %v311
        %v399 = vunpack.c.l.b16 %v312
        %v400 = vunpack.c.h.b16 %v312
        %v401 = vunpack.c.l.b16 %v313
        %v402 = vunpack.c.l.b16 %v314
        %v403 = vunpack.c.h.b16 %v314
        %v404 = vunpack.c.l.b16 %v315
        %v405 = vunpack.c.l.b16 %v316
        %v406 = vunpack.c.h.b16 %v316
        %v407 = vunpack.c.l.b16 %v317
        %v408 = vunpack.c.l.b16 %v318
        %v409 = vunpack.c.h.b16 %v318
        %v410 = vunpack.c.l.b16 %v319
        %v411 = vunpack.c.l.b16 %v320
        %v412 = vunpack.c.h.b16 %v320
        %v413 = vunpack.c.l.b16 %v321
        %v414 = vunpack.c.l.b16 %v322
        %v415 = vunpack.c.h.b16 %v322
        %v416 = vunpack.c.l.b16 %v323
        %v417 = vunpack.c.l.b16 %v324
        %v418 = vunpack.c.h.b16 %v324
        %v419 = vunpack.c.l.b16 %v325
        %v420 = vunpack.c.l.b16 %v326
        %v421 = vunpack.c.h.b16 %v326
        %v422 = vunpack.c.l.b16 %v327
        %v423 = vunpack.c.l.b16 %v328
        %v424 = vunpack.c.h.b16 %v328
        %v425 = vunpack.c.l.b16 %v329
        %v426 = vunpack.c.l.b16 %v330
        %v427 = vunpack.c.h.b16 %v330
        %v428 = vunpack.c.l.b16 %v331
        %v429 = vpack.c.b16 %v384, %v381
        %v430 = vpack.c.b16 %v385, %v382
        %v431 = vpack.c.b16 %v386, %v383
        %v432 = vpack.c.b16 %v390, %v387
        %v433 = vpack.c.b16 %v391, %v388
        %v434 = vpack.c.b16 %v392, %v389
        %v435 = vpack.c.b16 %v396, %v393
        %v436 = vpack.c.b16 %v397, %v394
        %v437 = vpack.c.b16 %v398, %v395
        %v438 = vpack.c.b16 %v402, %v399
        %v439 = vpack.c.b16 %v403, %v400
        %v440 = vpack.c.b16 %v404, %v401
        %v441 = vpack.c.b16 %v408, %v405
        %v442 = vpack.c.b16 %v409, %v406
        %v443 = vpack.c.b16 %v410, %v407
        %v444 = vpack.c.b16 %v414, %v411
        %v445 = vpack.c.b16 %v415, %v412
        %v446 = vpack.c.b16 %v416, %v413
        %v447 = vpack.c.b16 %v420, %v417
        %v448 = vpack.c.b16 %v421, %v418
        %v449 = vpack.c.b16 %v422, %v419
        %v450 = vpack.c.b16 %v426, %v423
        %v451 = vpack.c.b16 %v427, %v424
        %v452 = vpack.c.b16 %v428, %v425
        %477 = vmatprep.subr.bf16.mxu0 %v451
        %478 = vmatpush1.bf16.msra.mxu0 %v450
        %479 = vmatprep.subr.bf16.mxu0 %v448
        %480 = vmatpush1.bf16.msra.mxu0 %v447
        %481 = vmatprep.subr.bf16.mxu0 %v445
        %482 = vmatpush1.bf16.msra.mxu0 %v444
        %483 = vmatprep.subr.bf16.mxu0 %v442
        %484 = vmatpush1.bf16.msra.mxu0 %v441
        %485 = vmatprep.subr.bf16.mxu0 %v439
        %486 = vmatpush1.bf16.msra.mxu0 %v438
        %487 = vmatprep.subr.bf16.mxu0 %v436
        %488 = vmatpush1.bf16.msra.mxu0 %v435
        %489 = vmatprep.subr.bf16.mxu0 %v433
        %490 = vmatpush1.bf16.msra.mxu0 %v432
        %491 = vmatprep.subr.bf16.mxu0 %v430
        %492 = vmatpush1.bf16.msra.mxu0 %v429
        %493 = vmatprep.subr.bf16.mxu0 0
        %494 = vmatpush2.bf16.msra.mxu0 0
        %495 = vmatprep.subr.bf16.mxu0 0
        %496 = vmatpush2.bf16.msra.mxu0 0
        %497 = vmatprep.subr.bf16.mxu0 0
        %498 = vmatpush2.bf16.msra.mxu0 0
        %499 = vmatprep.subr.bf16.mxu0 0
        %500 = vmatpush2.bf16.msra.mxu0 0
        %501 = vmatprep.subr.bf16.mxu0 0
        %502 = vmatpush2.bf16.msra.mxu0 0
        %503 = vmatprep.subr.bf16.mxu0 0
        %504 = vmatpush2.bf16.msra.mxu0 0
        %505 = vmatprep.subr.bf16.mxu0 0
        %506 = vmatpush2.bf16.msra.mxu0 0
        %507 = vmatprep.subr.bf16.mxu0 0
        %508 = vmatpush2.bf16.msra.mxu0 0
        %509 = vmatprep.mubr.bf16.mxu0 0
        %510 = vmatmul.mubr.bf16.gmra.mxu0 %v298
        %v511 = vpop.f32.mrf.mxu0
        %v512 = vadd.f32 %v337, %v511
        %v513 = vpop.f32.mrf.mxu0
        %v514 = vadd.f32 %v341, %v513
        %v515 = vpop.f32.mrf.mxu0
        %v516 = vadd.f32 %v337, %v515
        %v517 = vpop.f32.mrf.mxu0
        %v518 = vadd.f32 %v341, %v517
        %519 = vmatprep.mubr.bf16.mxu0 0
        %520 = vmatmul.mubr.bf16.gmra.mxu0 %v299
        %v521 = vpop.f32.mrf.mxu0
        %v522 = vadd.f32 %v337, %v521
        %v523 = vpop.f32.mrf.mxu0
        %v524 = vadd.f32 %v341, %v523
        %v525 = vpop.f32.mrf.mxu0
        %v526 = vadd.f32 %v337, %v525
        %v527 = vpop.f32.mrf.mxu0
        %v528 = vadd.f32 %v341, %v527
        %529 = vdwg.mxu0
        %530 = vmatprep.subr.bf16.mxu0 0
        %531 = vmatpush1.bf16.msra.mxu0 %v452
        %532 = vmatprep.subr.bf16.mxu0 0
        %533 = vmatpush1.bf16.msra.mxu0 %v449
        %534 = vmatprep.subr.bf16.mxu0 0
        %535 = vmatpush1.bf16.msra.mxu0 %v446
        %536 = vmatprep.subr.bf16.mxu0 0
        %537 = vmatpush1.bf16.msra.mxu0 %v443
        %538 = vmatprep.subr.bf16.mxu0 0
        %539 = vmatpush1.bf16.msra.mxu0 %v440
        %540 = vmatprep.subr.bf16.mxu0 0
        %541 = vmatpush1.bf16.msra.mxu0 %v437
        %542 = vmatprep.subr.bf16.mxu0 0
        %543 = vmatpush1.bf16.msra.mxu0 %v434
        %544 = vmatprep.subr.bf16.mxu0 0
        %545 = vmatpush1.bf16.msra.mxu0 %v431
        %546 = vmatprep.subr.bf16.mxu0 0
        %547 = vmatpush2.bf16.msra.mxu0 0
        %548 = vmatprep.subr.bf16.mxu0 0
        %549 = vmatpush2.bf16.msra.mxu0 0
        %550 = vmatprep.subr.bf16.mxu0 0
        %551 = vmatpush2.bf16.msra.mxu0 0
        %552 = vmatprep.subr.bf16.mxu0 0
        %553 = vmatpush2.bf16.msra.mxu0 0
        %554 = vmatprep.subr.bf16.mxu0 0
        %555 = vmatpush2.bf16.msra.mxu0 0
        %556 = vmatprep.subr.bf16.mxu0 0
        %557 = vmatpush2.bf16.msra.mxu0 0
        %558 = vmatprep.subr.bf16.mxu0 0
        %559 = vmatpush2.bf16.msra.mxu0 0
        %560 = vmatprep.subr.bf16.mxu0 0
        %561 = vmatpush2.bf16.msra.mxu0 0
        %562 = vmatprep.mubr.bf16.mxu0 0
        %563 = vmatmul.mubr.bf16.gmra.mxu0 %v298
        %v564 = vpop.f32.mrf.mxu0
        %v565 = vadd.f32 %v345, %v564
        %v566 = vpop.f32.mrf.mxu0
        %v567 = vpop.f32.mrf.mxu0
        %v568 = vadd.f32 %v345, %v567
        %v569 = vpop.f32.mrf.mxu0
        %570 = vmatprep.mubr.bf16.mxu0 0
        %571 = vmatmul.mubr.bf16.gmra.mxu0 %v299
        %v572 = vpop.f32.mrf.mxu0
        %v573 = vadd.f32 %v345, %v572
        %v574 = vpop.f32.mrf.mxu0
        %v575 = vpop.f32.mrf.mxu0
        %v576 = vadd.f32 %v345, %v575
        %v577 = vpop.f32.mrf.mxu0
        %578 = vdwg.mxu0
        %v579 = vmul.f32 %v512, 0.17677669
        %v580 = vmul.f32 %v516, 0.17677669
        %v581 = vmul.f32 %v522, 0.17677669
        %v582 = vmul.f32 %v526, 0.17677669
        %v583 = vpack.c.bf16 %v580, %v579
        %v584 = vpack.c.bf16 %v582, %v581
        %587 = vrot.lane.b32.xlu0 %v583, 96
        %v588 = vpop.permute.xlu0 %587
        %589 = vrot.lane.b32.xlu0 %v584, 96
        %v590 = vpop.permute.xlu0 %589
        %591 = vrot.lane.b32.xlu0 %v583, 64
        %v592 = vpop.permute.xlu0 %591
        %593 = vrot.lane.b32.xlu0 %v584, 64
        %v594 = vpop.permute.xlu0 %593
        %595 = vrot.lane.b32.xlu0 %v583, 32
        %v596 = vpop.permute.xlu0 %595
        %597 = vrot.lane.b32.xlu0 %v584, 32
        %v598 = vpop.permute.xlu0 %597
        %v601 = vpack.i.b16 %v588, %v583
        %v603 = vshrl.u32 %v583, 16
        %v604 = vshrl.u32 %v588, 16
        %v605 = vpack.i.b16 %v604, %v603
        %v609 = vpack.i.b16 %v596, %v592
        %v611 = vshrl.u32 %v592, 16
        %v612 = vshrl.u32 %v596, 16
        %v613 = vpack.i.b16 %v612, %v611
        %v616 = vpack.i.b16 0, 0
        %v618 = vshrl.u32 0, 16
        %v619 = vpack.i.b16 %v618, %v618
        %v623 = vpack.i.b16 %v590, %v584
        %v625 = vshrl.u32 %v584, 16
        %v626 = vshrl.u32 %v590, 16
        %v627 = vpack.i.b16 %v626, %v625
        %v631 = vpack.i.b16 %v598, %v594
        %v633 = vshrl.u32 %v594, 16
        %v634 = vshrl.u32 %v598, 16
        %v635 = vpack.i.b16 %v634, %v633
        %v637 = vcombine.high %v601, %v616
        %v639 = vunpack.c.l.s4 1983009808
        %v640 = vunpack.c.0.s8 %v639
        %v641 = vlaneseq
        %v642 = vshrl.u32 %v641, 7
        %v643 = vsub.s32 %v640, %v642
        %v644 = vrot.slane %v601, %v643
        %v646 = vunpack.c.l.s4 1983009808
        %v647 = vunpack.c.0.s8 %v646
        %v648 = vlaneseq
        %v649 = vshrl.u32 %v648, 7
        %v650 = vsub.s32 %v647, %v649
        %v651 = vrot.slane %v637, %v650
        %v652 = vcombine.high %v609, %v616
        %v654 = vunpack.c.l.s4 1983009808
        %v655 = vunpack.c.0.s8 %v654
        %v656 = vlaneseq
        %v657 = vshrl.u32 %v656, 7
        %v658 = vsub.s32 %v655, %v657
        %v659 = vrot.slane %v609, %v658
        %v661 = vunpack.c.l.s4 1983009808
        %v662 = vunpack.c.0.s8 %v661
        %v663 = vlaneseq
        %v664 = vshrl.u32 %v663, 7
        %v665 = vsub.s32 %v662, %v664
        %v666 = vrot.slane %v652, %v665
        %v667 = vcombine.low %v644, %v659
        %v668 = vcombine.high %v644, %v659
        %v670 = vunpack.c.l.s4 1934713408
        %v671 = vunpack.c.0.s8 %v670
        %v672 = vlaneseq
        %v673 = vshrl.u32 %v672, 7
        %v674 = vsub.s32 %v671, %v673
        %v675 = vrot.slane %v667, %v674
        %v677 = vunpack.c.l.s4 1934713408
        %v678 = vunpack.c.0.s8 %v677
        %v679 = vlaneseq
        %v680 = vshrl.u32 %v679, 7
        %v681 = vsub.s32 %v678, %v680
        %v682 = vrot.slane %v668, %v681
        %v683 = vcombine.low %v651, %v666
        %v684 = vcombine.high %v651, %v666
        %v686 = vunpack.c.l.s4 1934713408
        %v687 = vunpack.c.0.s8 %v686
        %v688 = vlaneseq
        %v689 = vshrl.u32 %v688, 7
        %v690 = vsub.s32 %v687, %v689
        %v691 = vrot.slane %v683, %v690
        %v693 = vunpack.c.l.s4 1934713408
        %v694 = vunpack.c.0.s8 %v693
        %v695 = vlaneseq
        %v696 = vshrl.u32 %v695, 7
        %v697 = vsub.s32 %v694, %v696
        %v698 = vrot.slane %v684, %v697
        %v699 = vcombine.high %v675, 0
        %v700 = vcombine.high %v682, 0
        %v701 = vcombine.high %v691, 0
        %v702 = vcombine.high %v698, 0
        %v703 = vcombine.high %v605, %v619
        %v705 = vunpack.c.l.s4 1983009808
        %v706 = vunpack.c.0.s8 %v705
        %v707 = vlaneseq
        %v708 = vshrl.u32 %v707, 7
        %v709 = vsub.s32 %v706, %v708
        %v710 = vrot.slane %v605, %v709
        %v712 = vunpack.c.l.s4 1983009808
        %v713 = vunpack.c.0.s8 %v712
        %v714 = vlaneseq
        %v715 = vshrl.u32 %v714, 7
        %v716 = vsub.s32 %v713, %v715
        %v717 = vrot.slane %v703, %v716
        %v718 = vcombine.high %v613, %v619
        %v720 = vunpack.c.l.s4 1983009808
        %v721 = vunpack.c.0.s8 %v720
        %v722 = vlaneseq
        %v723 = vshrl.u32 %v722, 7
        %v724 = vsub.s32 %v721, %v723
        %v725 = vrot.slane %v613, %v724
        %v727 = vunpack.c.l.s4 1983009808
        %v728 = vunpack.c.0.s8 %v727
        %v729 = vlaneseq
        %v730 = vshrl.u32 %v729, 7
        %v731 = vsub.s32 %v728, %v730
        %v732 = vrot.slane %v718, %v731
        %v733 = vcombine.low %v710, %v725
        %v734 = vcombine.high %v710, %v725
        %v736 = vunpack.c.l.s4 1934713408
        %v737 = vunpack.c.0.s8 %v736
        %v738 = vlaneseq
        %v739 = vshrl.u32 %v738, 7
        %v740 = vsub.s32 %v737, %v739
        %v741 = vrot.slane %v733, %v740
        %v743 = vunpack.c.l.s4 1934713408
        %v744 = vunpack.c.0.s8 %v743
        %v745 = vlaneseq
        %v746 = vshrl.u32 %v745, 7
        %v747 = vsub.s32 %v744, %v746
        %v748 = vrot.slane %v734, %v747
        %v749 = vcombine.low %v717, %v732
        %v750 = vcombine.high %v717, %v732
        %v752 = vunpack.c.l.s4 1934713408
        %v753 = vunpack.c.0.s8 %v752
        %v754 = vlaneseq
        %v755 = vshrl.u32 %v754, 7
        %v756 = vsub.s32 %v753, %v755
        %v757 = vrot.slane %v749, %v756
        %v759 = vunpack.c.l.s4 1934713408
        %v760 = vunpack.c.0.s8 %v759
        %v761 = vlaneseq
        %v762 = vshrl.u32 %v761, 7
        %v763 = vsub.s32 %v760, %v762
        %v764 = vrot.slane %v750, %v763
        %v765 = vcombine.high %v741, 0
        %v766 = vcombine.high %v748, 0
        %v767 = vcombine.high %v757, 0
        %v768 = vcombine.high %v764, 0
        %v769 = vcombine.high %v623, %v616
        %v771 = vunpack.c.l.s4 1983009808
        %v772 = vunpack.c.0.s8 %v771
        %v773 = vlaneseq
        %v774 = vshrl.u32 %v773, 7
        %v775 = vsub.s32 %v772, %v774
        %v776 = vrot.slane %v623, %v775
        %v778 = vunpack.c.l.s4 1983009808
        %v779 = vunpack.c.0.s8 %v778
        %v780 = vlaneseq
        %v781 = vshrl.u32 %v780, 7
        %v782 = vsub.s32 %v779, %v781
        %v783 = vrot.slane %v769, %v782
        %v784 = vcombine.high %v631, %v616
        %v786 = vunpack.c.l.s4 1983009808
        %v787 = vunpack.c.0.s8 %v786
        %v788 = vlaneseq
        %v789 = vshrl.u32 %v788, 7
        %v790 = vsub.s32 %v787, %v789
        %v791 = vrot.slane %v631, %v790
        %v793 = vunpack.c.l.s4 1983009808
        %v794 = vunpack.c.0.s8 %v793
        %v795 = vlaneseq
        %v796 = vshrl.u32 %v795, 7
        %v797 = vsub.s32 %v794, %v796
        %v798 = vrot.slane %v784, %v797
        %v799 = vcombine.low %v776, %v791
        %v800 = vcombine.high %v776, %v791
        %v802 = vunpack.c.l.s4 1934713408
        %v803 = vunpack.c.0.s8 %v802
        %v804 = vlaneseq
        %v805 = vshrl.u32 %v804, 7
        %v806 = vsub.s32 %v803, %v805
        %v807 = vrot.slane %v799, %v806
        %v809 = vunpack.c.l.s4 1934713408
        %v810 = vunpack.c.0.s8 %v809
        %v811 = vlaneseq
        %v812 = vshrl.u32 %v811, 7
        %v813 = vsub.s32 %v810, %v812
        %v814 = vrot.slane %v800, %v813
        %v815 = vcombine.low %v783, %v798
        %v816 = vcombine.high %v783, %v798
        %v818 = vunpack.c.l.s4 1934713408
        %v819 = vunpack.c.0.s8 %v818
        %v820 = vlaneseq
        %v821 = vshrl.u32 %v820, 7
        %v822 = vsub.s32 %v819, %v821
        %v823 = vrot.slane %v815, %v822
        %v825 = vunpack.c.l.s4 1934713408
        %v826 = vunpack.c.0.s8 %v825
        %v827 = vlaneseq
        %v828 = vshrl.u32 %v827, 7
        %v829 = vsub.s32 %v826, %v828
        %v830 = vrot.slane %v816, %v829
        %v831 = vcombine.high %v807, 0
        %v832 = vcombine.high %v814, 0
        %v833 = vcombine.high %v823, 0
        %v834 = vcombine.high %v830, 0
        %v835 = vcombine.high %v627, %v619
        %v837 = vunpack.c.l.s4 1983009808
        %v838 = vunpack.c.0.s8 %v837
        %v839 = vlaneseq
        %v840 = vshrl.u32 %v839, 7
        %v841 = vsub.s32 %v838, %v840
        %v842 = vrot.slane %v627, %v841
        %v844 = vunpack.c.l.s4 1983009808
        %v845 = vunpack.c.0.s8 %v844
        %v846 = vlaneseq
        %v847 = vshrl.u32 %v846, 7
        %v848 = vsub.s32 %v845, %v847
        %v849 = vrot.slane %v835, %v848
        %v850 = vcombine.high %v635, %v619
        %v852 = vunpack.c.l.s4 1983009808
        %v853 = vunpack.c.0.s8 %v852
        %v854 = vlaneseq
        %v855 = vshrl.u32 %v854, 7
        %v856 = vsub.s32 %v853, %v855
        %v857 = vrot.slane %v635, %v856
        %v859 = vunpack.c.l.s4 1983009808
        %v860 = vunpack.c.0.s8 %v859
        %v861 = vlaneseq
        %v862 = vshrl.u32 %v861, 7
        %v863 = vsub.s32 %v860, %v862
        %v864 = vrot.slane %v850, %v863
        %v865 = vcombine.low %v842, %v857
        %v866 = vcombine.high %v842, %v857
        %v868 = vunpack.c.l.s4 1934713408
        %v869 = vunpack.c.0.s8 %v868
        %v870 = vlaneseq
        %v871 = vshrl.u32 %v870, 7
        %v872 = vsub.s32 %v869, %v871
        %v873 = vrot.slane %v865, %v872
        %v875 = vunpack.c.l.s4 1934713408
        %v876 = vunpack.c.0.s8 %v875
        %v877 = vlaneseq
        %v878 = vshrl.u32 %v877, 7
        %v879 = vsub.s32 %v876, %v878
        %v880 = vrot.slane %v866, %v879
        %v881 = vcombine.low %v849, %v864
        %v882 = vcombine.high %v849, %v864
        %v884 = vunpack.c.l.s4 1934713408
        %v885 = vunpack.c.0.s8 %v884
        %v886 = vlaneseq
        %v887 = vshrl.u32 %v886, 7
        %v888 = vsub.s32 %v885, %v887
        %v889 = vrot.slane %v881, %v888
        %v891 = vunpack.c.l.s4 1934713408
        %v892 = vunpack.c.0.s8 %v891
        %v893 = vlaneseq
        %v894 = vshrl.u32 %v893, 7
        %v895 = vsub.s32 %v892, %v894
        %v896 = vrot.slane %v882, %v895
        %v897 = vcombine.high %v873, 0
        %v898 = vcombine.high %v880, 0
        %v899 = vcombine.high %v889, 0
        %v900 = vcombine.high %v896, 0
        %v901 = vcombine.low %v675, %v682
        %v903 = vunpack.c.l.s4 1983009808
        %v904 = vunpack.c.0.s8 %v903
        %v905 = vlaneseq
        %v906 = vshrl.u32 %v905, 7
        %v907 = vsub.s32 %v904, %v906
        %v908 = vrot.slane %v901, %v907
        %v909 = vcombine.low %v699, %v700
        %v911 = vunpack.c.l.s4 1983009808
        %v912 = vunpack.c.0.s8 %v911
        %v913 = vlaneseq
        %v914 = vshrl.u32 %v913, 7
        %v915 = vsub.s32 %v912, %v914
        %v916 = vrot.slane %v909, %v915
        %v917 = vcombine.low %v691, %v698
        %v919 = vunpack.c.l.s4 1983009808
        %v920 = vunpack.c.0.s8 %v919
        %v921 = vlaneseq
        %v922 = vshrl.u32 %v921, 7
        %v923 = vsub.s32 %v920, %v922
        %v924 = vrot.slane %v917, %v923
        %v925 = vcombine.low %v701, %v702
        %v927 = vunpack.c.l.s4 1983009808
        %v928 = vunpack.c.0.s8 %v927
        %v929 = vlaneseq
        %v930 = vshrl.u32 %v929, 7
        %v931 = vsub.s32 %v928, %v930
        %v932 = vrot.slane %v925, %v931
        %v933 = vcombine.low %v908, %v916
        %v935 = vunpack.c.l.s4 1934713408
        %v936 = vunpack.c.0.s8 %v935
        %v937 = vlaneseq
        %v938 = vshrl.u32 %v937, 7
        %v939 = vsub.s32 %v936, %v938
        %v940 = vrot.slane %v933, %v939
        %v941 = vcombine.low %v924, %v932
        %v943 = vunpack.c.l.s4 1934713408
        %v944 = vunpack.c.0.s8 %v943
        %v945 = vlaneseq
        %v946 = vshrl.u32 %v945, 7
        %v947 = vsub.s32 %v944, %v946
        %v948 = vrot.slane %v941, %v947
        %v949 = vcombine.low %v940, %v948
        %v950 = vcombine.high %v940, %v948
        %v951 = vcombine.low %v741, %v748
        %v953 = vunpack.c.l.s4 1983009808
        %v954 = vunpack.c.0.s8 %v953
        %v955 = vlaneseq
        %v956 = vshrl.u32 %v955, 7
        %v957 = vsub.s32 %v954, %v956
        %v958 = vrot.slane %v951, %v957
        %v959 = vcombine.low %v765, %v766
        %v961 = vunpack.c.l.s4 1983009808
        %v962 = vunpack.c.0.s8 %v961
        %v963 = vlaneseq
        %v964 = vshrl.u32 %v963, 7
        %v965 = vsub.s32 %v962, %v964
        %v966 = vrot.slane %v959, %v965
        %v967 = vcombine.low %v757, %v764
        %v969 = vunpack.c.l.s4 1983009808
        %v970 = vunpack.c.0.s8 %v969
        %v971 = vlaneseq
        %v972 = vshrl.u32 %v971, 7
        %v973 = vsub.s32 %v970, %v972
        %v974 = vrot.slane %v967, %v973
        %v975 = vcombine.low %v767, %v768
        %v977 = vunpack.c.l.s4 1983009808
        %v978 = vunpack.c.0.s8 %v977
        %v979 = vlaneseq
        %v980 = vshrl.u32 %v979, 7
        %v981 = vsub.s32 %v978, %v980
        %v982 = vrot.slane %v975, %v981
        %v983 = vcombine.low %v958, %v966
        %v985 = vunpack.c.l.s4 1934713408
        %v986 = vunpack.c.0.s8 %v985
        %v987 = vlaneseq
        %v988 = vshrl.u32 %v987, 7
        %v989 = vsub.s32 %v986, %v988
        %v990 = vrot.slane %v983, %v989
        %v991 = vcombine.low %v974, %v982
        %v993 = vunpack.c.l.s4 1934713408
        %v994 = vunpack.c.0.s8 %v993
        %v995 = vlaneseq
        %v996 = vshrl.u32 %v995, 7
        %v997 = vsub.s32 %v994, %v996
        %v998 = vrot.slane %v991, %v997
        %v999 = vcombine.low %v990, %v998
        %v1000 = vcombine.high %v990, %v998
        %v1001 = vcombine.low %v807, %v814
        %v1003 = vunpack.c.l.s4 1983009808
        %v1004 = vunpack.c.0.s8 %v1003
        %v1005 = vlaneseq
        %v1006 = vshrl.u32 %v1005, 7
        %v1007 = vsub.s32 %v1004, %v1006
        %v1008 = vrot.slane %v1001, %v1007
        %v1009 = vcombine.low %v831, %v832
        %v1011 = vunpack.c.l.s4 1983009808
        %v1012 = vunpack.c.0.s8 %v1011
        %v1013 = vlaneseq
        %v1014 = vshrl.u32 %v1013, 7
        %v1015 = vsub.s32 %v1012, %v1014
        %v1016 = vrot.slane %v1009, %v1015
        %v1017 = vcombine.low %v823, %v830
        %v1019 = vunpack.c.l.s4 1983009808
        %v1020 = vunpack.c.0.s8 %v1019
        %v1021 = vlaneseq
        %v1022 = vshrl.u32 %v1021, 7
        %v1023 = vsub.s32 %v1020, %v1022
        %v1024 = vrot.slane %v1017, %v1023
        %v1025 = vcombine.low %v833, %v834
        %v1027 = vunpack.c.l.s4 1983009808
        %v1028 = vunpack.c.0.s8 %v1027
        %v1029 = vlaneseq
        %v1030 = vshrl.u32 %v1029, 7
        %v1031 = vsub.s32 %v1028, %v1030
        %v1032 = vrot.slane %v1025, %v1031
        %v1033 = vcombine.low %v1008, %v1016
        %v1035 = vunpack.c.l.s4 1934713408
        %v1036 = vunpack.c.0.s8 %v1035
        %v1037 = vlaneseq
        %v1038 = vshrl.u32 %v1037, 7
        %v1039 = vsub.s32 %v1036, %v1038
        %v1040 = vrot.slane %v1033, %v1039
        %v1041 = vcombine.low %v1024, %v1032
        %v1043 = vunpack.c.l.s4 1934713408
        %v1044 = vunpack.c.0.s8 %v1043
        %v1045 = vlaneseq
        %v1046 = vshrl.u32 %v1045, 7
        %v1047 = vsub.s32 %v1044, %v1046
        %v1048 = vrot.slane %v1041, %v1047
        %v1049 = vcombine.low %v1040, %v1048
        %v1050 = vcombine.high %v1040, %v1048
        %v1051 = vcombine.low %v873, %v880
        %v1053 = vunpack.c.l.s4 1983009808
        %v1054 = vunpack.c.0.s8 %v1053
        %v1055 = vlaneseq
        %v1056 = vshrl.u32 %v1055, 7
        %v1057 = vsub.s32 %v1054, %v1056
        %v1058 = vrot.slane %v1051, %v1057
        %v1059 = vcombine.low %v897, %v898
        %v1061 = vunpack.c.l.s4 1983009808
        %v1062 = vunpack.c.0.s8 %v1061
        %v1063 = vlaneseq
        %v1064 = vshrl.u32 %v1063, 7
        %v1065 = vsub.s32 %v1062, %v1064
        %v1066 = vrot.slane %v1059, %v1065
        %v1067 = vcombine.low %v889, %v896
        %v1069 = vunpack.c.l.s4 1983009808
        %v1070 = vunpack.c.0.s8 %v1069
        %v1071 = vlaneseq
        %v1072 = vshrl.u32 %v1071, 7
        %v1073 = vsub.s32 %v1070, %v1072
        %v1074 = vrot.slane %v1067, %v1073
        %v1075 = vcombine.low %v899, %v900
        %v1077 = vunpack.c.l.s4 1983009808
        %v1078 = vunpack.c.0.s8 %v1077
        %v1079 = vlaneseq
        %v1080 = vshrl.u32 %v1079, 7
        %v1081 = vsub.s32 %v1078, %v1080
        %v1082 = vrot.slane %v1075, %v1081
        %v1083 = vcombine.low %v1058, %v1066
        %v1085 = vunpack.c.l.s4 1934713408
        %v1086 = vunpack.c.0.s8 %v1085
        %v1087 = vlaneseq
        %v1088 = vshrl.u32 %v1087, 7
        %v1089 = vsub.s32 %v1086, %v1088
        %v1090 = vrot.slane %v1083, %v1089
        %v1091 = vcombine.low %v1074, %v1082
        %v1093 = vunpack.c.l.s4 1934713408
        %v1094 = vunpack.c.0.s8 %v1093
        %v1095 = vlaneseq
        %v1096 = vshrl.u32 %v1095, 7
        %v1097 = vsub.s32 %v1094, %v1096
        %v1098 = vrot.slane %v1091, %v1097
        %v1099 = vcombine.low %v1090, %v1098
        %v1100 = vcombine.high %v1090, %v1098
        %v1103 = vpack.i.b16 %v999, %v949
        %v1104 = vshrl.u32 %v949, 16
        %v1105 = vshrl.u32 %v999, 16
        %v1106 = vpack.i.b16 %v1105, %v1104
        %v1109 = vpack.i.b16 %v1000, %v950
        %v1110 = vshrl.u32 %v950, 16
        %v1111 = vshrl.u32 %v1000, 16
        %v1112 = vpack.i.b16 %v1111, %v1110
        %v1115 = vpack.i.b16 %v1099, %v1049
        %v1116 = vshrl.u32 %v1049, 16
        %v1117 = vshrl.u32 %v1099, 16
        %v1118 = vpack.i.b16 %v1117, %v1116
        %v1121 = vpack.i.b16 %v1100, %v1050
        %v1122 = vshrl.u32 %v1050, 16
        %v1123 = vshrl.u32 %v1100, 16
        %v1124 = vpack.i.b16 %v1123, %v1122
        %v1125 = vunpack.c.l.b16 %v1103
        %v1126 = vunpack.c.h.b16 %v1103
        %v1127 = vunpack.c.l.b16 %v1115
        %v1128 = vunpack.c.h.b16 %v1115
        %v1129 = vunpack.c.l.b16 %v1106
        %v1130 = vunpack.c.h.b16 %v1106
        %v1131 = vunpack.c.l.b16 %v1118
        %v1132 = vunpack.c.h.b16 %v1118
        %v1133 = vunpack.c.l.b16 %v1109
        %v1134 = vunpack.c.h.b16 %v1109
        %v1135 = vunpack.c.l.b16 %v1121
        %v1136 = vunpack.c.h.b16 %v1121
        %v1137 = vunpack.c.l.b16 %v1112
        %v1138 = vunpack.c.h.b16 %v1112
        %v1139 = vunpack.c.l.b16 %v1124
        %v1140 = vunpack.c.h.b16 %v1124
        %v1141 = vpack.c.b16 %v1125, %v1125
        %v1142 = vpack.c.b16 %v1126, %v1126
        %v1143 = vpack.c.b16 %v1127, %v1127
        %v1144 = vpack.c.b16 %v1128, %v1128
        %v1145 = vpack.c.b16 %v1129, %v1129
        %v1146 = vpack.c.b16 %v1130, %v1130
        %v1147 = vpack.c.b16 %v1131, %v1131
        %v1148 = vpack.c.b16 %v1132, %v1132
        %v1149 = vpack.c.b16 %v1133, %v1133
        %v1150 = vpack.c.b16 %v1134, %v1134
        %v1151 = vpack.c.b16 %v1135, %v1135
        %v1152 = vpack.c.b16 %v1136, %v1136
        %v1153 = vpack.c.b16 %v1137, %v1137
        %v1154 = vpack.c.b16 %v1138, %v1138
        %v1155 = vpack.c.b16 %v1139, %v1139
        %v1156 = vpack.c.b16 %v1140, %v1140
        %vm1173 = vcmask 257024
        %1174 = vst.msk [vmem:[%s276] sm:$0xf] %vm1173, %v1141
        %1175 = vst.msk [vmem:[%s276 + $0x4] sm:$0xf] %vm1173, %v1142
        %1176 = vst.msk [vmem:[%s276 + $0x8] sm:$0xf] %vm1173, %v1143
        %1177 = vst.msk [vmem:[%s276 + $0xc] sm:$0xf] %vm1173, %v1144
        %1178 = vst.msk [vmem:[%s276 + $0x10] sm:$0xf] %vm1173, %v1145
        %1179 = vst.msk [vmem:[%s276 + $0x14] sm:$0xf] %vm1173, %v1146
        %1180 = vst.msk [vmem:[%s276 + $0x18] sm:$0xf] %vm1173, %v1147
        %1181 = vst.msk [vmem:[%s276 + $0x1c] sm:$0xf] %vm1173, %v1148
        %1182 = vst.msk [vmem:[%s276 + $0x20] sm:$0xf] %vm1173, %v1149
        %1183 = vst.msk [vmem:[%s276 + $0x24] sm:$0xf] %vm1173, %v1150
        %1184 = vst.msk [vmem:[%s276 + $0x28] sm:$0xf] %vm1173, %v1151
        %1185 = vst.msk [vmem:[%s276 + $0x2c] sm:$0xf] %vm1173, %v1152
        %1186 = vst.msk [vmem:[%s276 + $0x30] sm:$0xf] %vm1173, %v1153
        %1187 = vst.msk [vmem:[%s276 + $0x34] sm:$0xf] %vm1173, %v1154
        %1188 = vst.msk [vmem:[%s276 + $0x38] sm:$0xf] %vm1173, %v1155
        %1189 = vst.msk [vmem:[%s276 + $0x3c] sm:$0xf] %vm1173, %v1156
        %v1190 = vpack.c.bf16 %v518, %v514
        %v1191 = vpack.c.bf16 %v528, %v524
        %1194 = vrot.lane.b32.xlu0 %v1190, 96
        %v1195 = vpop.permute.xlu0 %1194
        %1196 = vrot.lane.b32.xlu0 %v1191, 96
        %v1197 = vpop.permute.xlu0 %1196
        %1198 = vrot.lane.b32.xlu0 %v1190, 64
        %v1199 = vpop.permute.xlu0 %1198
        %1200 = vrot.lane.b32.xlu0 %v1191, 64
        %v1201 = vpop.permute.xlu0 %1200
        %1202 = vrot.lane.b32.xlu0 %v1190, 32
        %v1203 = vpop.permute.xlu0 %1202
        %1204 = vrot.lane.b32.xlu0 %v1191, 32
        %v1205 = vpop.permute.xlu0 %1204
        %v1208 = vpack.i.b16 %v1195, %v1190
        %v1210 = vshrl.u32 %v1190, 16
        %v1211 = vshrl.u32 %v1195, 16
        %v1212 = vpack.i.b16 %v1211, %v1210
        %v1216 = vpack.i.b16 %v1203, %v1199
        %v1218 = vshrl.u32 %v1199, 16
        %v1219 = vshrl.u32 %v1203, 16
        %v1220 = vpack.i.b16 %v1219, %v1218
        %v1224 = vpack.i.b16 %v1197, %v1191
        %v1226 = vshrl.u32 %v1191, 16
        %v1227 = vshrl.u32 %v1197, 16
        %v1228 = vpack.i.b16 %v1227, %v1226
        %v1232 = vpack.i.b16 %v1205, %v1201
        %v1234 = vshrl.u32 %v1201, 16
        %v1235 = vshrl.u32 %v1205, 16
        %v1236 = vpack.i.b16 %v1235, %v1234
        %v1238 = vcombine.high %v1208, %v616
        %v1240 = vunpack.c.l.s4 1983009808
        %v1241 = vunpack.c.0.s8 %v1240
        %v1242 = vlaneseq
        %v1243 = vshrl.u32 %v1242, 7
        %v1244 = vsub.s32 %v1241, %v1243
        %v1245 = vrot.slane %v1208, %v1244
        %v1247 = vunpack.c.l.s4 1983009808
        %v1248 = vunpack.c.0.s8 %v1247
        %v1249 = vlaneseq
        %v1250 = vshrl.u32 %v1249, 7
        %v1251 = vsub.s32 %v1248, %v1250
        %v1252 = vrot.slane %v1238, %v1251
        %v1253 = vcombine.high %v1216, %v616
        %v1255 = vunpack.c.l.s4 1983009808
        %v1256 = vunpack.c.0.s8 %v1255
        %v1257 = vlaneseq
        %v1258 = vshrl.u32 %v1257, 7
        %v1259 = vsub.s32 %v1256, %v1258
        %v1260 = vrot.slane %v1216, %v1259
        %v1262 = vunpack.c.l.s4 1983009808
        %v1263 = vunpack.c.0.s8 %v1262
        %v1264 = vlaneseq
        %v1265 = vshrl.u32 %v1264, 7
        %v1266 = vsub.s32 %v1263, %v1265
        %v1267 = vrot.slane %v1253, %v1266
        %v1268 = vcombine.low %v1245, %v1260
        %v1269 = vcombine.high %v1245, %v1260
        %v1271 = vunpack.c.l.s4 1934713408
        %v1272 = vunpack.c.0.s8 %v1271
        %v1273 = vlaneseq
        %v1274 = vshrl.u32 %v1273, 7
        %v1275 = vsub.s32 %v1272, %v1274
        %v1276 = vrot.slane %v1268, %v1275
        %v1278 = vunpack.c.l.s4 1934713408
        %v1279 = vunpack.c.0.s8 %v1278
        %v1280 = vlaneseq
        %v1281 = vshrl.u32 %v1280, 7
        %v1282 = vsub.s32 %v1279, %v1281
        %v1283 = vrot.slane %v1269, %v1282
        %v1284 = vcombine.low %v1252, %v1267
        %v1285 = vcombine.high %v1252, %v1267
        %v1287 = vunpack.c.l.s4 1934713408
        %v1288 = vunpack.c.0.s8 %v1287
        %v1289 = vlaneseq
        %v1290 = vshrl.u32 %v1289, 7
        %v1291 = vsub.s32 %v1288, %v1290
        %v1292 = vrot.slane %v1284, %v1291
        %v1294 = vunpack.c.l.s4 1934713408
        %v1295 = vunpack.c.0.s8 %v1294
        %v1296 = vlaneseq
        %v1297 = vshrl.u32 %v1296, 7
        %v1298 = vsub.s32 %v1295, %v1297
        %v1299 = vrot.slane %v1285, %v1298
        %v1300 = vcombine.high %v1276, 0
        %v1301 = vcombine.high %v1283, 0
        %v1302 = vcombine.high %v1292, 0
        %v1303 = vcombine.high %v1299, 0
        %v1304 = vcombine.high %v1212, %v619
        %v1306 = vunpack.c.l.s4 1983009808
        %v1307 = vunpack.c.0.s8 %v1306
        %v1308 = vlaneseq
        %v1309 = vshrl.u32 %v1308, 7
        %v1310 = vsub.s32 %v1307, %v1309
        %v1311 = vrot.slane %v1212, %v1310
        %v1313 = vunpack.c.l.s4 1983009808
        %v1314 = vunpack.c.0.s8 %v1313
        %v1315 = vlaneseq
        %v1316 = vshrl.u32 %v1315, 7
        %v1317 = vsub.s32 %v1314, %v1316
        %v1318 = vrot.slane %v1304, %v1317
        %v1319 = vcombine.high %v1220, %v619
        %v1321 = vunpack.c.l.s4 1983009808
        %v1322 = vunpack.c.0.s8 %v1321
        %v1323 = vlaneseq
        %v1324 = vshrl.u32 %v1323, 7
        %v1325 = vsub.s32 %v1322, %v1324
        %v1326 = vrot.slane %v1220, %v1325
        %v1328 = vunpack.c.l.s4 1983009808
        %v1329 = vunpack.c.0.s8 %v1328
        %v1330 = vlaneseq
        %v1331 = vshrl.u32 %v1330, 7
        %v1332 = vsub.s32 %v1329, %v1331
        %v1333 = vrot.slane %v1319, %v1332
        %v1334 = vcombine.low %v1311, %v1326
        %v1335 = vcombine.high %v1311, %v1326
        %v1337 = vunpack.c.l.s4 1934713408
        %v1338 = vunpack.c.0.s8 %v1337
        %v1339 = vlaneseq
        %v1340 = vshrl.u32 %v1339, 7
        %v1341 = vsub.s32 %v1338, %v1340
        %v1342 = vrot.slane %v1334, %v1341
        %v1344 = vunpack.c.l.s4 1934713408
        %v1345 = vunpack.c.0.s8 %v1344
        %v1346 = vlaneseq
        %v1347 = vshrl.u32 %v1346, 7
        %v1348 = vsub.s32 %v1345, %v1347
        %v1349 = vrot.slane %v1335, %v1348
        %v1350 = vcombine.low %v1318, %v1333
        %v1351 = vcombine.high %v1318, %v1333
        %v1353 = vunpack.c.l.s4 1934713408
        %v1354 = vunpack.c.0.s8 %v1353
        %v1355 = vlaneseq
        %v1356 = vshrl.u32 %v1355, 7
        %v1357 = vsub.s32 %v1354, %v1356
        %v1358 = vrot.slane %v1350, %v1357
        %v1360 = vunpack.c.l.s4 1934713408
        %v1361 = vunpack.c.0.s8 %v1360
        %v1362 = vlaneseq
        %v1363 = vshrl.u32 %v1362, 7
        %v1364 = vsub.s32 %v1361, %v1363
        %v1365 = vrot.slane %v1351, %v1364
        %v1366 = vcombine.high %v1342, 0
        %v1367 = vcombine.high %v1349, 0
        %v1368 = vcombine.high %v1358, 0
        %v1369 = vcombine.high %v1365, 0
        %v1370 = vcombine.high %v1224, %v616
        %v1372 = vunpack.c.l.s4 1983009808
        %v1373 = vunpack.c.0.s8 %v1372
        %v1374 = vlaneseq
        %v1375 = vshrl.u32 %v1374, 7
        %v1376 = vsub.s32 %v1373, %v1375
        %v1377 = vrot.slane %v1224, %v1376
        %v1379 = vunpack.c.l.s4 1983009808
        %v1380 = vunpack.c.0.s8 %v1379
        %v1381 = vlaneseq
        %v1382 = vshrl.u32 %v1381, 7
        %v1383 = vsub.s32 %v1380, %v1382
        %v1384 = vrot.slane %v1370, %v1383
        %v1385 = vcombine.high %v1232, %v616
        %v1387 = vunpack.c.l.s4 1983009808
        %v1388 = vunpack.c.0.s8 %v1387
        %v1389 = vlaneseq
        %v1390 = vshrl.u32 %v1389, 7
        %v1391 = vsub.s32 %v1388, %v1390
        %v1392 = vrot.slane %v1232, %v1391
        %v1394 = vunpack.c.l.s4 1983009808
        %v1395 = vunpack.c.0.s8 %v1394
        %v1396 = vlaneseq
        %v1397 = vshrl.u32 %v1396, 7
        %v1398 = vsub.s32 %v1395, %v1397
        %v1399 = vrot.slane %v1385, %v1398
        %v1400 = vcombine.low %v1377, %v1392
        %v1401 = vcombine.high %v1377, %v1392
        %v1403 = vunpack.c.l.s4 1934713408
        %v1404 = vunpack.c.0.s8 %v1403
        %v1405 = vlaneseq
        %v1406 = vshrl.u32 %v1405, 7
        %v1407 = vsub.s32 %v1404, %v1406
        %v1408 = vrot.slane %v1400, %v1407
        %v1410 = vunpack.c.l.s4 1934713408
        %v1411 = vunpack.c.0.s8 %v1410
        %v1412 = vlaneseq
        %v1413 = vshrl.u32 %v1412, 7
        %v1414 = vsub.s32 %v1411, %v1413
        %v1415 = vrot.slane %v1401, %v1414
        %v1416 = vcombine.low %v1384, %v1399
        %v1417 = vcombine.high %v1384, %v1399
        %v1419 = vunpack.c.l.s4 1934713408
        %v1420 = vunpack.c.0.s8 %v1419
        %v1421 = vlaneseq
        %v1422 = vshrl.u32 %v1421, 7
        %v1423 = vsub.s32 %v1420, %v1422
        %v1424 = vrot.slane %v1416, %v1423
        %v1426 = vunpack.c.l.s4 1934713408
        %v1427 = vunpack.c.0.s8 %v1426
        %v1428 = vlaneseq
        %v1429 = vshrl.u32 %v1428, 7
        %v1430 = vsub.s32 %v1427, %v1429
        %v1431 = vrot.slane %v1417, %v1430
        %v1432 = vcombine.high %v1408, 0
        %v1433 = vcombine.high %v1415, 0
        %v1434 = vcombine.high %v1424, 0
        %v1435 = vcombine.high %v1431, 0
        %v1436 = vcombine.high %v1228, %v619
        %v1438 = vunpack.c.l.s4 1983009808
        %v1439 = vunpack.c.0.s8 %v1438
        %v1440 = vlaneseq
        %v1441 = vshrl.u32 %v1440, 7
        %v1442 = vsub.s32 %v1439, %v1441
        %v1443 = vrot.slane %v1228, %v1442
        %v1445 = vunpack.c.l.s4 1983009808
        %v1446 = vunpack.c.0.s8 %v1445
        %v1447 = vlaneseq
        %v1448 = vshrl.u32 %v1447, 7
        %v1449 = vsub.s32 %v1446, %v1448
        %v1450 = vrot.slane %v1436, %v1449
        %v1451 = vcombine.high %v1236, %v619
        %v1453 = vunpack.c.l.s4 1983009808
        %v1454 = vunpack.c.0.s8 %v1453
        %v1455 = vlaneseq
        %v1456 = vshrl.u32 %v1455, 7
        %v1457 = vsub.s32 %v1454, %v1456
        %v1458 = vrot.slane %v1236, %v1457
        %v1460 = vunpack.c.l.s4 1983009808
        %v1461 = vunpack.c.0.s8 %v1460
        %v1462 = vlaneseq
        %v1463 = vshrl.u32 %v1462, 7
        %v1464 = vsub.s32 %v1461, %v1463
        %v1465 = vrot.slane %v1451, %v1464
        %v1466 = vcombine.low %v1443, %v1458
        %v1467 = vcombine.high %v1443, %v1458
        %v1469 = vunpack.c.l.s4 1934713408
        %v1470 = vunpack.c.0.s8 %v1469
        %v1471 = vlaneseq
        %v1472 = vshrl.u32 %v1471, 7
        %v1473 = vsub.s32 %v1470, %v1472
        %v1474 = vrot.slane %v1466, %v1473
        %v1476 = vunpack.c.l.s4 1934713408
        %v1477 = vunpack.c.0.s8 %v1476
        %v1478 = vlaneseq
        %v1479 = vshrl.u32 %v1478, 7
        %v1480 = vsub.s32 %v1477, %v1479
        %v1481 = vrot.slane %v1467, %v1480
        %v1482 = vcombine.low %v1450, %v1465
        %v1483 = vcombine.high %v1450, %v1465
        %v1485 = vunpack.c.l.s4 1934713408
        %v1486 = vunpack.c.0.s8 %v1485
        %v1487 = vlaneseq
        %v1488 = vshrl.u32 %v1487, 7
        %v1489 = vsub.s32 %v1486, %v1488
        %v1490 = vrot.slane %v1482, %v1489
        %v1492 = vunpack.c.l.s4 1934713408
        %v1493 = vunpack.c.0.s8 %v1492
        %v1494 = vlaneseq
        %v1495 = vshrl.u32 %v1494, 7
        %v1496 = vsub.s32 %v1493, %v1495
        %v1497 = vrot.slane %v1483, %v1496
        %v1498 = vcombine.high %v1474, 0
        %v1499 = vcombine.high %v1481, 0
        %v1500 = vcombine.high %v1490, 0
        %v1501 = vcombine.high %v1497, 0
        %v1502 = vcombine.low %v1276, %v1283
        %v1504 = vunpack.c.l.s4 1983009808
        %v1505 = vunpack.c.0.s8 %v1504
        %v1506 = vlaneseq
        %v1507 = vshrl.u32 %v1506, 7
        %v1508 = vsub.s32 %v1505, %v1507
        %v1509 = vrot.slane %v1502, %v1508
        %v1510 = vcombine.low %v1300, %v1301
        %v1512 = vunpack.c.l.s4 1983009808
        %v1513 = vunpack.c.0.s8 %v1512
        %v1514 = vlaneseq
        %v1515 = vshrl.u32 %v1514, 7
        %v1516 = vsub.s32 %v1513, %v1515
        %v1517 = vrot.slane %v1510, %v1516
        %v1518 = vcombine.low %v1292, %v1299
        %v1520 = vunpack.c.l.s4 1983009808
        %v1521 = vunpack.c.0.s8 %v1520
        %v1522 = vlaneseq
        %v1523 = vshrl.u32 %v1522, 7
        %v1524 = vsub.s32 %v1521, %v1523
        %v1525 = vrot.slane %v1518, %v1524
        %v1526 = vcombine.low %v1302, %v1303
        %v1528 = vunpack.c.l.s4 1983009808
        %v1529 = vunpack.c.0.s8 %v1528
        %v1530 = vlaneseq
        %v1531 = vshrl.u32 %v1530, 7
        %v1532 = vsub.s32 %v1529, %v1531
        %v1533 = vrot.slane %v1526, %v1532
        %v1534 = vcombine.low %v1509, %v1517
        %v1536 = vunpack.c.l.s4 1934713408
        %v1537 = vunpack.c.0.s8 %v1536
        %v1538 = vlaneseq
        %v1539 = vshrl.u32 %v1538, 7
        %v1540 = vsub.s32 %v1537, %v1539
        %v1541 = vrot.slane %v1534, %v1540
        %v1542 = vcombine.low %v1525, %v1533
        %v1544 = vunpack.c.l.s4 1934713408
        %v1545 = vunpack.c.0.s8 %v1544
        %v1546 = vlaneseq
        %v1547 = vshrl.u32 %v1546, 7
        %v1548 = vsub.s32 %v1545, %v1547
        %v1549 = vrot.slane %v1542, %v1548
        %v1550 = vcombine.low %v1541, %v1549
        %v1551 = vcombine.high %v1541, %v1549
        %v1552 = vcombine.low %v1342, %v1349
        %v1554 = vunpack.c.l.s4 1983009808
        %v1555 = vunpack.c.0.s8 %v1554
        %v1556 = vlaneseq
        %v1557 = vshrl.u32 %v1556, 7
        %v1558 = vsub.s32 %v1555, %v1557
        %v1559 = vrot.slane %v1552, %v1558
        %v1560 = vcombine.low %v1366, %v1367
        %v1562 = vunpack.c.l.s4 1983009808
        %v1563 = vunpack.c.0.s8 %v1562
        %v1564 = vlaneseq
        %v1565 = vshrl.u32 %v1564, 7
        %v1566 = vsub.s32 %v1563, %v1565
        %v1567 = vrot.slane %v1560, %v1566
        %v1568 = vcombine.low %v1358, %v1365
        %v1570 = vunpack.c.l.s4 1983009808
        %v1571 = vunpack.c.0.s8 %v1570
        %v1572 = vlaneseq
        %v1573 = vshrl.u32 %v1572, 7
        %v1574 = vsub.s32 %v1571, %v1573
        %v1575 = vrot.slane %v1568, %v1574
        %v1576 = vcombine.low %v1368, %v1369
        %v1578 = vunpack.c.l.s4 1983009808
        %v1579 = vunpack.c.0.s8 %v1578
        %v1580 = vlaneseq
        %v1581 = vshrl.u32 %v1580, 7
        %v1582 = vsub.s32 %v1579, %v1581
        %v1583 = vrot.slane %v1576, %v1582
        %v1584 = vcombine.low %v1559, %v1567
        %v1586 = vunpack.c.l.s4 1934713408
        %v1587 = vunpack.c.0.s8 %v1586
        %v1588 = vlaneseq
        %v1589 = vshrl.u32 %v1588, 7
        %v1590 = vsub.s32 %v1587, %v1589
        %v1591 = vrot.slane %v1584, %v1590
        %v1592 = vcombine.low %v1575, %v1583
        %v1594 = vunpack.c.l.s4 1934713408
        %v1595 = vunpack.c.0.s8 %v1594
        %v1596 = vlaneseq
        %v1597 = vshrl.u32 %v1596, 7
        %v1598 = vsub.s32 %v1595, %v1597
        %v1599 = vrot.slane %v1592, %v1598
        %v1600 = vcombine.low %v1591, %v1599
        %v1601 = vcombine.high %v1591, %v1599
        %v1602 = vcombine.low %v1408, %v1415
        %v1604 = vunpack.c.l.s4 1983009808
        %v1605 = vunpack.c.0.s8 %v1604
        %v1606 = vlaneseq
        %v1607 = vshrl.u32 %v1606, 7
        %v1608 = vsub.s32 %v1605, %v1607
        %v1609 = vrot.slane %v1602, %v1608
        %v1610 = vcombine.low %v1432, %v1433
        %v1612 = vunpack.c.l.s4 1983009808
        %v1613 = vunpack.c.0.s8 %v1612
        %v1614 = vlaneseq
        %v1615 = vshrl.u32 %v1614, 7
        %v1616 = vsub.s32 %v1613, %v1615
        %v1617 = vrot.slane %v1610, %v1616
        %v1618 = vcombine.low %v1424, %v1431
        %v1620 = vunpack.c.l.s4 1983009808
        %v1621 = vunpack.c.0.s8 %v1620
        %v1622 = vlaneseq
        %v1623 = vshrl.u32 %v1622, 7
        %v1624 = vsub.s32 %v1621, %v1623
        %v1625 = vrot.slane %v1618, %v1624
        %v1626 = vcombine.low %v1434, %v1435
        %v1628 = vunpack.c.l.s4 1983009808
        %v1629 = vunpack.c.0.s8 %v1628
        %v1630 = vlaneseq
        %v1631 = vshrl.u32 %v1630, 7
        %v1632 = vsub.s32 %v1629, %v1631
        %v1633 = vrot.slane %v1626, %v1632
        %v1634 = vcombine.low %v1609, %v1617
        %v1636 = vunpack.c.l.s4 1934713408
        %v1637 = vunpack.c.0.s8 %v1636
        %v1638 = vlaneseq
        %v1639 = vshrl.u32 %v1638, 7
        %v1640 = vsub.s32 %v1637, %v1639
        %v1641 = vrot.slane %v1634, %v1640
        %v1642 = vcombine.low %v1625, %v1633
        %v1644 = vunpack.c.l.s4 1934713408
        %v1645 = vunpack.c.0.s8 %v1644
        %v1646 = vlaneseq
        %v1647 = vshrl.u32 %v1646, 7
        %v1648 = vsub.s32 %v1645, %v1647
        %v1649 = vrot.slane %v1642, %v1648
        %v1650 = vcombine.low %v1641, %v1649
        %v1651 = vcombine.high %v1641, %v1649
        %v1652 = vcombine.low %v1474, %v1481
        %v1654 = vunpack.c.l.s4 1983009808
        %v1655 = vunpack.c.0.s8 %v1654
        %v1656 = vlaneseq
        %v1657 = vshrl.u32 %v1656, 7
        %v1658 = vsub.s32 %v1655, %v1657
        %v1659 = vrot.slane %v1652, %v1658
        %v1660 = vcombine.low %v1498, %v1499
        %v1662 = vunpack.c.l.s4 1983009808
        %v1663 = vunpack.c.0.s8 %v1662
        %v1664 = vlaneseq
        %v1665 = vshrl.u32 %v1664, 7
        %v1666 = vsub.s32 %v1663, %v1665
        %v1667 = vrot.slane %v1660, %v1666
        %v1668 = vcombine.low %v1490, %v1497
        %v1670 = vunpack.c.l.s4 1983009808
        %v1671 = vunpack.c.0.s8 %v1670
        %v1672 = vlaneseq
        %v1673 = vshrl.u32 %v1672, 7
        %v1674 = vsub.s32 %v1671, %v1673
        %v1675 = vrot.slane %v1668, %v1674
        %v1676 = vcombine.low %v1500, %v1501
        %v1678 = vunpack.c.l.s4 1983009808
        %v1679 = vunpack.c.0.s8 %v1678
        %v1680 = vlaneseq
        %v1681 = vshrl.u32 %v1680, 7
        %v1682 = vsub.s32 %v1679, %v1681
        %v1683 = vrot.slane %v1676, %v1682
        %v1684 = vcombine.low %v1659, %v1667
        %v1686 = vunpack.c.l.s4 1934713408
        %v1687 = vunpack.c.0.s8 %v1686
        %v1688 = vlaneseq
        %v1689 = vshrl.u32 %v1688, 7
        %v1690 = vsub.s32 %v1687, %v1689
        %v1691 = vrot.slane %v1684, %v1690
        %v1692 = vcombine.low %v1675, %v1683
        %v1694 = vunpack.c.l.s4 1934713408
        %v1695 = vunpack.c.0.s8 %v1694
        %v1696 = vlaneseq
        %v1697 = vshrl.u32 %v1696, 7
        %v1698 = vsub.s32 %v1695, %v1697
        %v1699 = vrot.slane %v1692, %v1698
        %v1700 = vcombine.low %v1691, %v1699
        %v1701 = vcombine.high %v1691, %v1699
        %v1704 = vpack.i.b16 %v1600, %v1550
        %v1705 = vshrl.u32 %v1550, 16
        %v1706 = vshrl.u32 %v1600, 16
        %v1707 = vpack.i.b16 %v1706, %v1705
        %v1710 = vpack.i.b16 %v1601, %v1551
        %v1711 = vshrl.u32 %v1551, 16
        %v1712 = vshrl.u32 %v1601, 16
        %v1713 = vpack.i.b16 %v1712, %v1711
        %v1716 = vpack.i.b16 %v1700, %v1650
        %v1717 = vshrl.u32 %v1650, 16
        %v1718 = vshrl.u32 %v1700, 16
        %v1719 = vpack.i.b16 %v1718, %v1717
        %v1722 = vpack.i.b16 %v1701, %v1651
        %v1723 = vshrl.u32 %v1651, 16
        %v1724 = vshrl.u32 %v1701, 16
        %v1725 = vpack.i.b16 %v1724, %v1723
        %v1726 = vunpack.c.l.b16 %v1704
        %v1727 = vunpack.c.h.b16 %v1704
        %v1728 = vunpack.c.l.b16 %v1716
        %v1729 = vunpack.c.h.b16 %v1716
        %v1730 = vunpack.c.l.b16 %v1707
        %v1731 = vunpack.c.h.b16 %v1707
        %v1732 = vunpack.c.l.b16 %v1719
        %v1733 = vunpack.c.h.b16 %v1719
        %v1734 = vunpack.c.l.b16 %v1710
        %v1735 = vunpack.c.h.b16 %v1710
        %v1736 = vunpack.c.l.b16 %v1722
        %v1737 = vunpack.c.h.b16 %v1722
        %v1738 = vunpack.c.l.b16 %v1713
        %v1739 = vunpack.c.h.b16 %v1713
        %v1740 = vunpack.c.l.b16 %v1725
        %v1741 = vunpack.c.h.b16 %v1725
        %v1742 = vpack.c.b16 %v1726, %v1726
        %v1743 = vpack.c.b16 %v1727, %v1727
        %v1744 = vpack.c.b16 %v1728, %v1728
        %v1745 = vpack.c.b16 %v1729, %v1729
        %v1746 = vpack.c.b16 %v1730, %v1730
        %v1747 = vpack.c.b16 %v1731, %v1731
        %v1748 = vpack.c.b16 %v1732, %v1732
        %v1749 = vpack.c.b16 %v1733, %v1733
        %v1750 = vpack.c.b16 %v1734, %v1734
        %v1751 = vpack.c.b16 %v1735, %v1735
        %v1752 = vpack.c.b16 %v1736, %v1736
        %v1753 = vpack.c.b16 %v1737, %v1737
        %v1754 = vpack.c.b16 %v1738, %v1738
        %v1755 = vpack.c.b16 %v1739, %v1739
        %v1756 = vpack.c.b16 %v1740, %v1740
        %v1757 = vpack.c.b16 %v1741, %v1741
        %1774 = vst.msk [vmem:[%s282] sm:$0xf] %vm1173, %v1742
        %1775 = vst.msk [vmem:[%s282 + $0x4] sm:$0xf] %vm1173, %v1743
        %1776 = vst.msk [vmem:[%s282 + $0x8] sm:$0xf] %vm1173, %v1744
        %1777 = vst.msk [vmem:[%s282 + $0xc] sm:$0xf] %vm1173, %v1745
        %1778 = vst.msk [vmem:[%s282 + $0x10] sm:$0xf] %vm1173, %v1746
        %1779 = vst.msk [vmem:[%s282 + $0x14] sm:$0xf] %vm1173, %v1747
        %1780 = vst.msk [vmem:[%s282 + $0x18] sm:$0xf] %vm1173, %v1748
        %1781 = vst.msk [vmem:[%s282 + $0x1c] sm:$0xf] %vm1173, %v1749
        %1782 = vst.msk [vmem:[%s282 + $0x20] sm:$0xf] %vm1173, %v1750
        %1783 = vst.msk [vmem:[%s282 + $0x24] sm:$0xf] %vm1173, %v1751
        %1784 = vst.msk [vmem:[%s282 + $0x28] sm:$0xf] %vm1173, %v1752
        %1785 = vst.msk [vmem:[%s282 + $0x2c] sm:$0xf] %vm1173, %v1753
        %1786 = vst.msk [vmem:[%s282 + $0x30] sm:$0xf] %vm1173, %v1754
        %1787 = vst.msk [vmem:[%s282 + $0x34] sm:$0xf] %vm1173, %v1755
        %1788 = vst.msk [vmem:[%s282 + $0x38] sm:$0xf] %vm1173, %v1756
        %1789 = vst.msk [vmem:[%s282 + $0x3c] sm:$0xf] %vm1173, %v1757
        %v1790 = vpack.c.bf16 %v568, %v565
        %v1791 = vpack.c.bf16 %v576, %v573
        %1794 = vrot.lane.b32.xlu0 %v1790, 96
        %v1795 = vpop.permute.xlu0 %1794
        %1796 = vrot.lane.b32.xlu0 %v1791, 96
        %v1797 = vpop.permute.xlu0 %1796
        %1798 = vrot.lane.b32.xlu0 %v1790, 64
        %v1799 = vpop.permute.xlu0 %1798
        %1800 = vrot.lane.b32.xlu0 %v1791, 64
        %v1801 = vpop.permute.xlu0 %1800
        %1802 = vrot.lane.b32.xlu0 %v1790, 32
        %v1803 = vpop.permute.xlu0 %1802
        %1804 = vrot.lane.b32.xlu0 %v1791, 32
        %v1805 = vpop.permute.xlu0 %1804
        %v1808 = vpack.i.b16 %v1795, %v1790
        %v1810 = vshrl.u32 %v1790, 16
        %v1811 = vshrl.u32 %v1795, 16
        %v1812 = vpack.i.b16 %v1811, %v1810
        %v1816 = vpack.i.b16 %v1803, %v1799
        %v1818 = vshrl.u32 %v1799, 16
        %v1819 = vshrl.u32 %v1803, 16
        %v1820 = vpack.i.b16 %v1819, %v1818
        %v1824 = vpack.i.b16 %v1797, %v1791
        %v1826 = vshrl.u32 %v1791, 16
        %v1827 = vshrl.u32 %v1797, 16
        %v1828 = vpack.i.b16 %v1827, %v1826
        %v1832 = vpack.i.b16 %v1805, %v1801
        %v1834 = vshrl.u32 %v1801, 16
        %v1835 = vshrl.u32 %v1805, 16
        %v1836 = vpack.i.b16 %v1835, %v1834
        %v1838 = vcombine.high %v1808, %v616
        %v1840 = vunpack.c.l.s4 1983009808
        %v1841 = vunpack.c.0.s8 %v1840
        %v1842 = vlaneseq
        %v1843 = vshrl.u32 %v1842, 7
        %v1844 = vsub.s32 %v1841, %v1843
        %v1845 = vrot.slane %v1808, %v1844
        %v1847 = vunpack.c.l.s4 1983009808
        %v1848 = vunpack.c.0.s8 %v1847
        %v1849 = vlaneseq
        %v1850 = vshrl.u32 %v1849, 7
        %v1851 = vsub.s32 %v1848, %v1850
        %v1852 = vrot.slane %v1838, %v1851
        %v1853 = vcombine.high %v1816, %v616
        %v1855 = vunpack.c.l.s4 1983009808
        %v1856 = vunpack.c.0.s8 %v1855
        %v1857 = vlaneseq
        %v1858 = vshrl.u32 %v1857, 7
        %v1859 = vsub.s32 %v1856, %v1858
        %v1860 = vrot.slane %v1816, %v1859
        %v1862 = vunpack.c.l.s4 1983009808
        %v1863 = vunpack.c.0.s8 %v1862
        %v1864 = vlaneseq
        %v1865 = vshrl.u32 %v1864, 7
        %v1866 = vsub.s32 %v1863, %v1865
        %v1867 = vrot.slane %v1853, %v1866
        %v1868 = vcombine.low %v1845, %v1860
        %v1869 = vcombine.high %v1845, %v1860
        %v1871 = vunpack.c.l.s4 1934713408
        %v1872 = vunpack.c.0.s8 %v1871
        %v1873 = vlaneseq
        %v1874 = vshrl.u32 %v1873, 7
        %v1875 = vsub.s32 %v1872, %v1874
        %v1876 = vrot.slane %v1868, %v1875
        %v1878 = vunpack.c.l.s4 1934713408
        %v1879 = vunpack.c.0.s8 %v1878
        %v1880 = vlaneseq
        %v1881 = vshrl.u32 %v1880, 7
        %v1882 = vsub.s32 %v1879, %v1881
        %v1883 = vrot.slane %v1869, %v1882
        %v1884 = vcombine.low %v1852, %v1867
        %v1885 = vcombine.high %v1852, %v1867
        %v1887 = vunpack.c.l.s4 1934713408
        %v1888 = vunpack.c.0.s8 %v1887
        %v1889 = vlaneseq
        %v1890 = vshrl.u32 %v1889, 7
        %v1891 = vsub.s32 %v1888, %v1890
        %v1892 = vrot.slane %v1884, %v1891
        %v1894 = vunpack.c.l.s4 1934713408
        %v1895 = vunpack.c.0.s8 %v1894
        %v1896 = vlaneseq
        %v1897 = vshrl.u32 %v1896, 7
        %v1898 = vsub.s32 %v1895, %v1897
        %v1899 = vrot.slane %v1885, %v1898
        %v1900 = vcombine.high %v1876, 0
        %v1901 = vcombine.high %v1883, 0
        %v1902 = vcombine.high %v1892, 0
        %v1903 = vcombine.high %v1899, 0
        %v1904 = vcombine.high %v1812, %v619
        %v1906 = vunpack.c.l.s4 1983009808
        %v1907 = vunpack.c.0.s8 %v1906
        %v1908 = vlaneseq
        %v1909 = vshrl.u32 %v1908, 7
        %v1910 = vsub.s32 %v1907, %v1909
        %v1911 = vrot.slane %v1812, %v1910
        %v1913 = vunpack.c.l.s4 1983009808
        %v1914 = vunpack.c.0.s8 %v1913
        %v1915 = vlaneseq
        %v1916 = vshrl.u32 %v1915, 7
        %v1917 = vsub.s32 %v1914, %v1916
        %v1918 = vrot.slane %v1904, %v1917
        %v1919 = vcombine.high %v1820, %v619
        %v1921 = vunpack.c.l.s4 1983009808
        %v1922 = vunpack.c.0.s8 %v1921
        %v1923 = vlaneseq
        %v1924 = vshrl.u32 %v1923, 7
        %v1925 = vsub.s32 %v1922, %v1924
        %v1926 = vrot.slane %v1820, %v1925
        %v1928 = vunpack.c.l.s4 1983009808
        %v1929 = vunpack.c.0.s8 %v1928
        %v1930 = vlaneseq
        %v1931 = vshrl.u32 %v1930, 7
        %v1932 = vsub.s32 %v1929, %v1931
        %v1933 = vrot.slane %v1919, %v1932
        %v1934 = vcombine.low %v1911, %v1926
        %v1935 = vcombine.high %v1911, %v1926
        %v1937 = vunpack.c.l.s4 1934713408
        %v1938 = vunpack.c.0.s8 %v1937
        %v1939 = vlaneseq
        %v1940 = vshrl.u32 %v1939, 7
        %v1941 = vsub.s32 %v1938, %v1940
        %v1942 = vrot.slane %v1934, %v1941
        %v1944 = vunpack.c.l.s4 1934713408
        %v1945 = vunpack.c.0.s8 %v1944
        %v1946 = vlaneseq
        %v1947 = vshrl.u32 %v1946, 7
        %v1948 = vsub.s32 %v1945, %v1947
        %v1949 = vrot.slane %v1935, %v1948
        %v1950 = vcombine.low %v1918, %v1933
        %v1951 = vcombine.high %v1918, %v1933
        %v1953 = vunpack.c.l.s4 1934713408
        %v1954 = vunpack.c.0.s8 %v1953
        %v1955 = vlaneseq
        %v1956 = vshrl.u32 %v1955, 7
        %v1957 = vsub.s32 %v1954, %v1956
        %v1958 = vrot.slane %v1950, %v1957
        %v1960 = vunpack.c.l.s4 1934713408
        %v1961 = vunpack.c.0.s8 %v1960
        %v1962 = vlaneseq
        %v1963 = vshrl.u32 %v1962, 7
        %v1964 = vsub.s32 %v1961, %v1963
        %v1965 = vrot.slane %v1951, %v1964
        %v1966 = vcombine.high %v1942, 0
        %v1967 = vcombine.high %v1949, 0
        %v1968 = vcombine.high %v1958, 0
        %v1969 = vcombine.high %v1965, 0
        %v1970 = vcombine.high %v1824, %v616
        %v1972 = vunpack.c.l.s4 1983009808
        %v1973 = vunpack.c.0.s8 %v1972
        %v1974 = vlaneseq
        %v1975 = vshrl.u32 %v1974, 7
        %v1976 = vsub.s32 %v1973, %v1975
        %v1977 = vrot.slane %v1824, %v1976
        %v1979 = vunpack.c.l.s4 1983009808
        %v1980 = vunpack.c.0.s8 %v1979
        %v1981 = vlaneseq
        %v1982 = vshrl.u32 %v1981, 7
        %v1983 = vsub.s32 %v1980, %v1982
        %v1984 = vrot.slane %v1970, %v1983
        %v1985 = vcombine.high %v1832, %v616
        %v1987 = vunpack.c.l.s4 1983009808
        %v1988 = vunpack.c.0.s8 %v1987
        %v1989 = vlaneseq
        %v1990 = vshrl.u32 %v1989, 7
        %v1991 = vsub.s32 %v1988, %v1990
        %v1992 = vrot.slane %v1832, %v1991
        %v1994 = vunpack.c.l.s4 1983009808
        %v1995 = vunpack.c.0.s8 %v1994
        %v1996 = vlaneseq
        %v1997 = vshrl.u32 %v1996, 7
        %v1998 = vsub.s32 %v1995, %v1997
        %v1999 = vrot.slane %v1985, %v1998
        %v2000 = vcombine.low %v1977, %v1992
        %v2001 = vcombine.high %v1977, %v1992
        %v2003 = vunpack.c.l.s4 1934713408
        %v2004 = vunpack.c.0.s8 %v2003
        %v2005 = vlaneseq
        %v2006 = vshrl.u32 %v2005, 7
        %v2007 = vsub.s32 %v2004, %v2006
        %v2008 = vrot.slane %v2000, %v2007
        %v2010 = vunpack.c.l.s4 1934713408
        %v2011 = vunpack.c.0.s8 %v2010
        %v2012 = vlaneseq
        %v2013 = vshrl.u32 %v2012, 7
        %v2014 = vsub.s32 %v2011, %v2013
        %v2015 = vrot.slane %v2001, %v2014
        %v2016 = vcombine.low %v1984, %v1999
        %v2017 = vcombine.high %v1984, %v1999
        %v2019 = vunpack.c.l.s4 1934713408
        %v2020 = vunpack.c.0.s8 %v2019
        %v2021 = vlaneseq
        %v2022 = vshrl.u32 %v2021, 7
        %v2023 = vsub.s32 %v2020, %v2022
        %v2024 = vrot.slane %v2016, %v2023
        %v2026 = vunpack.c.l.s4 1934713408
        %v2027 = vunpack.c.0.s8 %v2026
        %v2028 = vlaneseq
        %v2029 = vshrl.u32 %v2028, 7
        %v2030 = vsub.s32 %v2027, %v2029
        %v2031 = vrot.slane %v2017, %v2030
        %v2032 = vcombine.high %v2008, 0
        %v2033 = vcombine.high %v2015, 0
        %v2034 = vcombine.high %v2024, 0
        %v2035 = vcombine.high %v2031, 0
        %v2036 = vcombine.high %v1828, %v619
        %v2038 = vunpack.c.l.s4 1983009808
        %v2039 = vunpack.c.0.s8 %v2038
        %v2040 = vlaneseq
        %v2041 = vshrl.u32 %v2040, 7
        %v2042 = vsub.s32 %v2039, %v2041
        %v2043 = vrot.slane %v1828, %v2042
        %v2045 = vunpack.c.l.s4 1983009808
        %v2046 = vunpack.c.0.s8 %v2045
        %v2047 = vlaneseq
        %v2048 = vshrl.u32 %v2047, 7
        %v2049 = vsub.s32 %v2046, %v2048
        %v2050 = vrot.slane %v2036, %v2049
        %v2051 = vcombine.high %v1836, %v619
        %v2053 = vunpack.c.l.s4 1983009808
        %v2054 = vunpack.c.0.s8 %v2053
        %v2055 = vlaneseq
        %v2056 = vshrl.u32 %v2055, 7
        %v2057 = vsub.s32 %v2054, %v2056
        %v2058 = vrot.slane %v1836, %v2057
        %v2060 = vunpack.c.l.s4 1983009808
        %v2061 = vunpack.c.0.s8 %v2060
        %v2062 = vlaneseq
        %v2063 = vshrl.u32 %v2062, 7
        %v2064 = vsub.s32 %v2061, %v2063
        %v2065 = vrot.slane %v2051, %v2064
        %v2066 = vcombine.low %v2043, %v2058
        %v2067 = vcombine.high %v2043, %v2058
        %v2069 = vunpack.c.l.s4 1934713408
        %v2070 = vunpack.c.0.s8 %v2069
        %v2071 = vlaneseq
        %v2072 = vshrl.u32 %v2071, 7
        %v2073 = vsub.s32 %v2070, %v2072
        %v2074 = vrot.slane %v2066, %v2073
        %v2076 = vunpack.c.l.s4 1934713408
        %v2077 = vunpack.c.0.s8 %v2076
        %v2078 = vlaneseq
        %v2079 = vshrl.u32 %v2078, 7
        %v2080 = vsub.s32 %v2077, %v2079
        %v2081 = vrot.slane %v2067, %v2080
        %v2082 = vcombine.low %v2050, %v2065
        %v2083 = vcombine.high %v2050, %v2065
        %v2085 = vunpack.c.l.s4 1934713408
        %v2086 = vunpack.c.0.s8 %v2085
        %v2087 = vlaneseq
        %v2088 = vshrl.u32 %v2087, 7
        %v2089 = vsub.s32 %v2086, %v2088
        %v2090 = vrot.slane %v2082, %v2089
        %v2092 = vunpack.c.l.s4 1934713408
        %v2093 = vunpack.c.0.s8 %v2092
        %v2094 = vlaneseq
        %v2095 = vshrl.u32 %v2094, 7
        %v2096 = vsub.s32 %v2093, %v2095
        %v2097 = vrot.slane %v2083, %v2096
        %v2098 = vcombine.high %v2074, 0
        %v2099 = vcombine.high %v2081, 0
        %v2100 = vcombine.high %v2090, 0
        %v2101 = vcombine.high %v2097, 0
        %v2102 = vcombine.low %v1876, %v1883
        %v2104 = vunpack.c.l.s4 1983009808
        %v2105 = vunpack.c.0.s8 %v2104
        %v2106 = vlaneseq
        %v2107 = vshrl.u32 %v2106, 7
        %v2108 = vsub.s32 %v2105, %v2107
        %v2109 = vrot.slane %v2102, %v2108
        %v2110 = vcombine.low %v1900, %v1901
        %v2112 = vunpack.c.l.s4 1983009808
        %v2113 = vunpack.c.0.s8 %v2112
        %v2114 = vlaneseq
        %v2115 = vshrl.u32 %v2114, 7
        %v2116 = vsub.s32 %v2113, %v2115
        %v2117 = vrot.slane %v2110, %v2116
        %v2118 = vcombine.low %v1892, %v1899
        %v2120 = vunpack.c.l.s4 1983009808
        %v2121 = vunpack.c.0.s8 %v2120
        %v2122 = vlaneseq
        %v2123 = vshrl.u32 %v2122, 7
        %v2124 = vsub.s32 %v2121, %v2123
        %v2125 = vrot.slane %v2118, %v2124
        %v2126 = vcombine.low %v1902, %v1903
        %v2128 = vunpack.c.l.s4 1983009808
        %v2129 = vunpack.c.0.s8 %v2128
        %v2130 = vlaneseq
        %v2131 = vshrl.u32 %v2130, 7
        %v2132 = vsub.s32 %v2129, %v2131
        %v2133 = vrot.slane %v2126, %v2132
        %v2134 = vcombine.low %v2109, %v2117
        %v2136 = vunpack.c.l.s4 1934713408
        %v2137 = vunpack.c.0.s8 %v2136
        %v2138 = vlaneseq
        %v2139 = vshrl.u32 %v2138, 7
        %v2140 = vsub.s32 %v2137, %v2139
        %v2141 = vrot.slane %v2134, %v2140
        %v2142 = vcombine.low %v2125, %v2133
        %v2144 = vunpack.c.l.s4 1934713408
        %v2145 = vunpack.c.0.s8 %v2144
        %v2146 = vlaneseq
        %v2147 = vshrl.u32 %v2146, 7
        %v2148 = vsub.s32 %v2145, %v2147
        %v2149 = vrot.slane %v2142, %v2148
        %v2150 = vcombine.low %v2141, %v2149
        %v2151 = vcombine.high %v2141, %v2149
        %v2152 = vcombine.low %v1942, %v1949
        %v2154 = vunpack.c.l.s4 1983009808
        %v2155 = vunpack.c.0.s8 %v2154
        %v2156 = vlaneseq
        %v2157 = vshrl.u32 %v2156, 7
        %v2158 = vsub.s32 %v2155, %v2157
        %v2159 = vrot.slane %v2152, %v2158
        %v2160 = vcombine.low %v1966, %v1967
        %v2162 = vunpack.c.l.s4 1983009808
        %v2163 = vunpack.c.0.s8 %v2162
        %v2164 = vlaneseq
        %v2165 = vshrl.u32 %v2164, 7
        %v2166 = vsub.s32 %v2163, %v2165
        %v2167 = vrot.slane %v2160, %v2166
        %v2168 = vcombine.low %v1958, %v1965
        %v2170 = vunpack.c.l.s4 1983009808
        %v2171 = vunpack.c.0.s8 %v2170
        %v2172 = vlaneseq
        %v2173 = vshrl.u32 %v2172, 7
        %v2174 = vsub.s32 %v2171, %v2173
        %v2175 = vrot.slane %v2168, %v2174
        %v2176 = vcombine.low %v1968, %v1969
        %v2178 = vunpack.c.l.s4 1983009808
        %v2179 = vunpack.c.0.s8 %v2178
        %v2180 = vlaneseq
        %v2181 = vshrl.u32 %v2180, 7
        %v2182 = vsub.s32 %v2179, %v2181
        %v2183 = vrot.slane %v2176, %v2182
        %v2184 = vcombine.low %v2159, %v2167
        %v2186 = vunpack.c.l.s4 1934713408
        %v2187 = vunpack.c.0.s8 %v2186
        %v2188 = vlaneseq
        %v2189 = vshrl.u32 %v2188, 7
        %v2190 = vsub.s32 %v2187, %v2189
        %v2191 = vrot.slane %v2184, %v2190
        %v2192 = vcombine.low %v2175, %v2183
        %v2194 = vunpack.c.l.s4 1934713408
        %v2195 = vunpack.c.0.s8 %v2194
        %v2196 = vlaneseq
        %v2197 = vshrl.u32 %v2196, 7
        %v2198 = vsub.s32 %v2195, %v2197
        %v2199 = vrot.slane %v2192, %v2198
        %v2200 = vcombine.low %v2191, %v2199
        %v2201 = vcombine.high %v2191, %v2199
        %v2202 = vcombine.low %v2008, %v2015
        %v2204 = vunpack.c.l.s4 1983009808
        %v2205 = vunpack.c.0.s8 %v2204
        %v2206 = vlaneseq
        %v2207 = vshrl.u32 %v2206, 7
        %v2208 = vsub.s32 %v2205, %v2207
        %v2209 = vrot.slane %v2202, %v2208
        %v2210 = vcombine.low %v2032, %v2033
        %v2212 = vunpack.c.l.s4 1983009808
        %v2213 = vunpack.c.0.s8 %v2212
        %v2214 = vlaneseq
        %v2215 = vshrl.u32 %v2214, 7
        %v2216 = vsub.s32 %v2213, %v2215
        %v2217 = vrot.slane %v2210, %v2216
        %v2218 = vcombine.low %v2024, %v2031
        %v2220 = vunpack.c.l.s4 1983009808
        %v2221 = vunpack.c.0.s8 %v2220
        %v2222 = vlaneseq
        %v2223 = vshrl.u32 %v2222, 7
        %v2224 = vsub.s32 %v2221, %v2223
        %v2225 = vrot.slane %v2218, %v2224
        %v2226 = vcombine.low %v2034, %v2035
        %v2228 = vunpack.c.l.s4 1983009808
        %v2229 = vunpack.c.0.s8 %v2228
        %v2230 = vlaneseq
        %v2231 = vshrl.u32 %v2230, 7
        %v2232 = vsub.s32 %v2229, %v2231
        %v2233 = vrot.slane %v2226, %v2232
        %v2234 = vcombine.low %v2209, %v2217
        %v2236 = vunpack.c.l.s4 1934713408
        %v2237 = vunpack.c.0.s8 %v2236
        %v2238 = vlaneseq
        %v2239 = vshrl.u32 %v2238, 7
        %v2240 = vsub.s32 %v2237, %v2239
        %v2241 = vrot.slane %v2234, %v2240
        %v2242 = vcombine.low %v2225, %v2233
        %v2244 = vunpack.c.l.s4 1934713408
        %v2245 = vunpack.c.0.s8 %v2244
        %v2246 = vlaneseq
        %v2247 = vshrl.u32 %v2246, 7
        %v2248 = vsub.s32 %v2245, %v2247
        %v2249 = vrot.slane %v2242, %v2248
        %v2250 = vcombine.low %v2241, %v2249
        %v2251 = vcombine.high %v2241, %v2249
        %v2252 = vcombine.low %v2074, %v2081
        %v2254 = vunpack.c.l.s4 1983009808
        %v2255 = vunpack.c.0.s8 %v2254
        %v2256 = vlaneseq
        %v2257 = vshrl.u32 %v2256, 7
        %v2258 = vsub.s32 %v2255, %v2257
        %v2259 = vrot.slane %v2252, %v2258
        %v2260 = vcombine.low %v2098, %v2099
        %v2262 = vunpack.c.l.s4 1983009808
        %v2263 = vunpack.c.0.s8 %v2262
        %v2264 = vlaneseq
        %v2265 = vshrl.u32 %v2264, 7
        %v2266 = vsub.s32 %v2263, %v2265
        %v2267 = vrot.slane %v2260, %v2266
        %v2268 = vcombine.low %v2090, %v2097
        %v2270 = vunpack.c.l.s4 1983009808
        %v2271 = vunpack.c.0.s8 %v2270
        %v2272 = vlaneseq
        %v2273 = vshrl.u32 %v2272, 7
        %v2274 = vsub.s32 %v2271, %v2273
        %v2275 = vrot.slane %v2268, %v2274
        %v2276 = vcombine.low %v2100, %v2101
        %v2278 = vunpack.c.l.s4 1983009808
        %v2279 = vunpack.c.0.s8 %v2278
        %v2280 = vlaneseq
        %v2281 = vshrl.u32 %v2280, 7
        %v2282 = vsub.s32 %v2279, %v2281
        %v2283 = vrot.slane %v2276, %v2282
        %v2284 = vcombine.low %v2259, %v2267
        %v2286 = vunpack.c.l.s4 1934713408
        %v2287 = vunpack.c.0.s8 %v2286
        %v2288 = vlaneseq
        %v2289 = vshrl.u32 %v2288, 7
        %v2290 = vsub.s32 %v2287, %v2289
        %v2291 = vrot.slane %v2284, %v2290
        %v2292 = vcombine.low %v2275, %v2283
        %v2294 = vunpack.c.l.s4 1934713408
        %v2295 = vunpack.c.0.s8 %v2294
        %v2296 = vlaneseq
        %v2297 = vshrl.u32 %v2296, 7
        %v2298 = vsub.s32 %v2295, %v2297
        %v2299 = vrot.slane %v2292, %v2298
        %v2300 = vcombine.low %v2291, %v2299
        %v2301 = vcombine.high %v2291, %v2299
        %v2304 = vpack.i.b16 %v2200, %v2150
        %v2305 = vshrl.u32 %v2150, 16
        %v2306 = vshrl.u32 %v2200, 16
        %v2307 = vpack.i.b16 %v2306, %v2305
        %v2310 = vpack.i.b16 %v2201, %v2151
        %v2311 = vshrl.u32 %v2151, 16
        %v2312 = vshrl.u32 %v2201, 16
        %v2313 = vpack.i.b16 %v2312, %v2311
        %v2316 = vpack.i.b16 %v2300, %v2250
        %v2317 = vshrl.u32 %v2250, 16
        %v2318 = vshrl.u32 %v2300, 16
        %v2319 = vpack.i.b16 %v2318, %v2317
        %v2322 = vpack.i.b16 %v2301, %v2251
        %v2323 = vshrl.u32 %v2251, 16
        %v2324 = vshrl.u32 %v2301, 16
        %v2325 = vpack.i.b16 %v2324, %v2323
        %v2326 = vunpack.c.l.b16 %v2304
        %v2327 = vunpack.c.h.b16 %v2304
        %v2328 = vunpack.c.l.b16 %v2316
        %v2329 = vunpack.c.h.b16 %v2316
        %v2330 = vunpack.c.l.b16 %v2307
        %v2331 = vunpack.c.h.b16 %v2307
        %v2332 = vunpack.c.l.b16 %v2319
        %v2333 = vunpack.c.h.b16 %v2319
        %v2334 = vunpack.c.l.b16 %v2310
        %v2335 = vunpack.c.h.b16 %v2310
        %v2336 = vunpack.c.l.b16 %v2322
        %v2337 = vunpack.c.h.b16 %v2322
        %v2338 = vunpack.c.l.b16 %v2313
        %v2339 = vunpack.c.h.b16 %v2313
        %v2340 = vunpack.c.l.b16 %v2325
        %v2341 = vunpack.c.h.b16 %v2325
        %v2342 = vpack.c.b16 %v2326, %v2326
        %v2343 = vpack.c.b16 %v2327, %v2327
        %v2344 = vpack.c.b16 %v2328, %v2328
        %v2345 = vpack.c.b16 %v2329, %v2329
        %v2346 = vpack.c.b16 %v2330, %v2330
        %v2347 = vpack.c.b16 %v2331, %v2331
        %v2348 = vpack.c.b16 %v2332, %v2332
        %v2349 = vpack.c.b16 %v2333, %v2333
        %v2350 = vpack.c.b16 %v2334, %v2334
        %v2351 = vpack.c.b16 %v2335, %v2335
        %v2352 = vpack.c.b16 %v2336, %v2336
        %v2353 = vpack.c.b16 %v2337, %v2337
        %v2354 = vpack.c.b16 %v2338, %v2338
        %v2355 = vpack.c.b16 %v2339, %v2339
        %v2356 = vpack.c.b16 %v2340, %v2340
        %v2357 = vpack.c.b16 %v2341, %v2341
        %2374 = vst.msk [vmem:[%s288] sm:$0xf] %vm1173, %v2342
        %2375 = vst.msk [vmem:[%s288 + $0x4] sm:$0xf] %vm1173, %v2343
        %2376 = vst.msk [vmem:[%s288 + $0x8] sm:$0xf] %vm1173, %v2344
        %2377 = vst.msk [vmem:[%s288 + $0xc] sm:$0xf] %vm1173, %v2345
        %2378 = vst.msk [vmem:[%s288 + $0x10] sm:$0xf] %vm1173, %v2346
        %2379 = vst.msk [vmem:[%s288 + $0x14] sm:$0xf] %vm1173, %v2347
        %2380 = vst.msk [vmem:[%s288 + $0x18] sm:$0xf] %vm1173, %v2348
        %2381 = vst.msk [vmem:[%s288 + $0x1c] sm:$0xf] %vm1173, %v2349
        %2382 = vst.msk [vmem:[%s288 + $0x20] sm:$0xf] %vm1173, %v2350
        %2383 = vst.msk [vmem:[%s288 + $0x24] sm:$0xf] %vm1173, %v2351
        %2384 = vst.msk [vmem:[%s288 + $0x28] sm:$0xf] %vm1173, %v2352
        %2385 = vst.msk [vmem:[%s288 + $0x2c] sm:$0xf] %vm1173, %v2353
        %2386 = vst.msk [vmem:[%s288 + $0x30] sm:$0xf] %vm1173, %v2354
        %2387 = vst.msk [vmem:[%s288 + $0x34] sm:$0xf] %vm1173, %v2355
        %2388 = vst.msk [vmem:[%s288 + $0x38] sm:$0xf] %vm1173, %v2356
        %2389 = vst.msk [vmem:[%s288 + $0x3c] sm:$0xf] %vm1173, %v2357
        %s2390 = sand.u32 %s113, 1
        %s2391 = sand.u32 %s113, 1
        %s2392 = smul.addr %s2391, 64
        %s2393 = scalar_lea.vmem [#allocation6], %s2392
        %s2394 = sand.u32 %s141, 1
        %s2395 = sand.u32 %s141, 1
        %s2396 = smul.addr %s2395, 64
        %s2397 = scalar_lea.vmem [#allocation7], %s2396
        %s2398 = sand.u32 %s169, 1
        %s2399 = sand.u32 %s169, 1
        %s2400 = smul.addr %s2399, 64
        %s2401 = scalar_lea.vmem [#allocation8], %s2400
        // Predicated region
        $region41: #{tpu_custom_call.1} parent=31 // pred_check
          %p2402 = pneg %p123
        $region42: #{tpu_custom_call.1} parent=31 // pred_check_branch
          %2404 = sbr.rel (%p2402) target = $region44
        $region43: #{tpu_custom_call.1} parent=31 // pred_region
          %s2405 = smul.u32 4, %s26
          %s2406 = smul.addr %s25, 32
          %s2407 = sadd.s32 %s2405, %s2406
          %s2408 = smul.addr %s2407, 4
          %s2409 = scalar_lea.vmem %s3, %s2408
          // Predicated region
          $region45: #{tpu_custom_call.1} parent=43 // pred_check
            _
          $region46: #{tpu_custom_call.1} parent=43 // pred_check_branch
            %2411 = sbr.rel (0) target = $region48
          $region47: #{tpu_custom_call.1} parent=43 // pred_region
            // Predicated region
            $region49: #{tpu_custom_call.1} parent=47 // pred_check
              _
            $region50: #{tpu_custom_call.1} parent=47 // pred_check_branch
              %2413 = sbr.rel target = $region52
            $region51: #{tpu_custom_call.1} parent=47 // pred_region
              // Predicated region
              $region64: #{tpu_custom_call.1} parent=51 // pred_check
                _
              $region65: #{tpu_custom_call.1} parent=51 // pred_check_branch
                %2459 = sbr.rel (0) target = $region67
              $region66: #{tpu_custom_call.1} parent=51 // pred_region
                loop: start=0, step=1, limit=1
                $region68: #{tpu_custom_call.1} parent=66 // loop_pre_header
                  _
                $region69: #{tpu_custom_call.1} parent=66 // loop_header
                  %s2461 = sphi 0, %s2465
                  %p2462 = scmp.ge.s32.totalorder %s2461, 1
                  %s2466 = sphi %s2393, %s2393
                  %s2467 = sphi %s2409, %s2409
                $region70: #{tpu_custom_call.1} parent=66 // loop_header_branch
                  %2464 = sbr.rel (%p2462) target = $region74
                $region71: #{tpu_custom_call.1} parent=66 // loop_body
                  _
                $region72: #{tpu_custom_call.1} parent=66 // loop_footer
                  %s2465 = sadd.s32 1, %s2461
                $region73: #{tpu_custom_call.1} parent=66 // loop_footer_branch
                  %2460 = sbr.rel target = $region69
                $region74: #{tpu_custom_call.1} parent=66 // loop_exit
                  _
                %s2469 = ssub.s32 16, 1
                loop: start=0, step=1, limit=1
                $region75: #{tpu_custom_call.1} parent=66 // loop_pre_header
                  _
                $region76: #{tpu_custom_call.1} parent=66 // loop_header
                  %s2471 = sphi 0, %s2475
                  %p2472 = scmp.ge.s32.totalorder %s2471, 1
                  %s2476 = sphi %s2393, %s2393
                  %s2477 = sphi %s2409, %s2409
                $region77: #{tpu_custom_call.1} parent=66 // loop_header_branch
                  %2474 = sbr.rel (%p2472) target = $region81
                $region78: #{tpu_custom_call.1} parent=66 // loop_body
                  %v2478 = vld [vmem:[%s2476] sm:%s2469]
                  %2479 = vst [vmem:[%s2477] sm:%s2469] %v2478
                  %v2480 = vld [vmem:[%s2476 + $0x4] sm:%s2469]
                  %2481 = vst [vmem:[%s2477 + $0x4] sm:%s2469] %v2480
                  %v2482 = vld [vmem:[%s2476 + $0x8] sm:%s2469]
                  %2483 = vst [vmem:[%s2477 + $0x8] sm:%s2469] %v2482
                  %v2484 = vld [vmem:[%s2476 + $0xc] sm:%s2469]
                  %2485 = vst [vmem:[%s2477 + $0xc] sm:%s2469] %v2484
                  %v2486 = vld [vmem:[%s2476 + $0x10] sm:%s2469]
                  %2487 = vst [vmem:[%s2477 + $0x20] sm:%s2469] %v2486
                  %v2488 = vld [vmem:[%s2476 + $0x14] sm:%s2469]
                  %2489 = vst [vmem:[%s2477 + $0x24] sm:%s2469] %v2488
                  %v2490 = vld [vmem:[%s2476 + $0x18] sm:%s2469]
                  %2491 = vst [vmem:[%s2477 + $0x28] sm:%s2469] %v2490
                  %v2492 = vld [vmem:[%s2476 + $0x1c] sm:%s2469]
                  %2493 = vst [vmem:[%s2477 + $0x2c] sm:%s2469] %v2492
                  %v2494 = vld [vmem:[%s2476 + $0x20] sm:%s2469]
                  %2495 = vst [vmem:[%s2477 + $0x40] sm:%s2469] %v2494
                  %v2496 = vld [vmem:[%s2476 + $0x24] sm:%s2469]
                  %2497 = vst [vmem:[%s2477 + $0x44] sm:%s2469] %v2496
                  %v2498 = vld [vmem:[%s2476 + $0x28] sm:%s2469]
                  %2499 = vst [vmem:[%s2477 + $0x48] sm:%s2469] %v2498
                  %v2500 = vld [vmem:[%s2476 + $0x2c] sm:%s2469]
                  %2501 = vst [vmem:[%s2477 + $0x4c] sm:%s2469] %v2500
                  %v2502 = vld [vmem:[%s2476 + $0x30] sm:%s2469]
                  %2503 = vst [vmem:[%s2477 + $0x60] sm:%s2469] %v2502
                  %v2504 = vld [vmem:[%s2476 + $0x34] sm:%s2469]
                  %2505 = vst [vmem:[%s2477 + $0x64] sm:%s2469] %v2504
                  %v2506 = vld [vmem:[%s2476 + $0x38] sm:%s2469]
                  %2507 = vst [vmem:[%s2477 + $0x68] sm:%s2469] %v2506
                  %v2508 = vld [vmem:[%s2476 + $0x3c] sm:%s2469]
                  %2509 = vst [vmem:[%s2477 + $0x6c] sm:%s2469] %v2508
                $region79: #{tpu_custom_call.1} parent=66 // loop_footer
                  %s2475 = sadd.s32 1, %s2471
                $region80: #{tpu_custom_call.1} parent=66 // loop_footer_branch
                  %2470 = sbr.rel target = $region76
                $region81: #{tpu_custom_call.1} parent=66 // loop_exit
                  _
              $region67: #{tpu_custom_call.1} parent=51 // pred_fallthru
                _
            $region52: #{tpu_custom_call.1} parent=47 // pred_fallthru
              _
            // Predicated region
            $region53: #{tpu_custom_call.1} parent=47 // pred_check
              _
            $region54: #{tpu_custom_call.1} parent=47 // pred_check_branch
              %2415 = sbr.rel (0) target = $region56
            $region55: #{tpu_custom_call.1} parent=47 // pred_region
              %s2417 = ssub.s32 16, 1
              loop: start=0, step=1, limit=1
              $region57: #{tpu_custom_call.1} parent=55 // loop_pre_header
                _
              $region58: #{tpu_custom_call.1} parent=55 // loop_header
                %s2419 = sphi 0, %s2423
                %p2420 = scmp.ge.s32.totalorder %s2419, 1
                %s2424 = sphi %s2393, %s2393
                %s2425 = sphi %s2409, %s2409
              $region59: #{tpu_custom_call.1} parent=55 // loop_header_branch
                %2422 = sbr.rel (%p2420) target = $region63
              $region60: #{tpu_custom_call.1} parent=55 // loop_body
                %v2426 = vld [vmem:[%s2424] sm:%s2417]
                %2427 = vst [vmem:[%s2425] sm:%s2417] %v2426
                %v2428 = vld [vmem:[%s2424 + $0x4] sm:%s2417]
                %2429 = vst [vmem:[%s2425 + $0x4] sm:%s2417] %v2428
                %v2430 = vld [vmem:[%s2424 + $0x8] sm:%s2417]
                %2431 = vst [vmem:[%s2425 + $0x8] sm:%s2417] %v2430
                %v2432 = vld [vmem:[%s2424 + $0xc] sm:%s2417]
                %2433 = vst [vmem:[%s2425 + $0xc] sm:%s2417] %v2432
                %v2434 = vld [vmem:[%s2424 + $0x10] sm:%s2417]
                %2435 = vst [vmem:[%s2425 + $0x20] sm:%s2417] %v2434
                %v2436 = vld [vmem:[%s2424 + $0x14] sm:%s2417]
                %2437 = vst [vmem:[%s2425 + $0x24] sm:%s2417] %v2436
                %v2438 = vld [vmem:[%s2424 + $0x18] sm:%s2417]
                %2439 = vst [vmem:[%s2425 + $0x28] sm:%s2417] %v2438
                %v2440 = vld [vmem:[%s2424 + $0x1c] sm:%s2417]
                %2441 = vst [vmem:[%s2425 + $0x2c] sm:%s2417] %v2440
                %v2442 = vld [vmem:[%s2424 + $0x20] sm:%s2417]
                %2443 = vst [vmem:[%s2425 + $0x40] sm:%s2417] %v2442
                %v2444 = vld [vmem:[%s2424 + $0x24] sm:%s2417]
                %2445 = vst [vmem:[%s2425 + $0x44] sm:%s2417] %v2444
                %v2446 = vld [vmem:[%s2424 + $0x28] sm:%s2417]
                %2447 = vst [vmem:[%s2425 + $0x48] sm:%s2417] %v2446
                %v2448 = vld [vmem:[%s2424 + $0x2c] sm:%s2417]
                %2449 = vst [vmem:[%s2425 + $0x4c] sm:%s2417] %v2448
                %v2450 = vld [vmem:[%s2424 + $0x30] sm:%s2417]
                %2451 = vst [vmem:[%s2425 + $0x60] sm:%s2417] %v2450
                %v2452 = vld [vmem:[%s2424 + $0x34] sm:%s2417]
                %2453 = vst [vmem:[%s2425 + $0x64] sm:%s2417] %v2452
                %v2454 = vld [vmem:[%s2424 + $0x38] sm:%s2417]
                %2455 = vst [vmem:[%s2425 + $0x68] sm:%s2417] %v2454
                %v2456 = vld [vmem:[%s2424 + $0x3c] sm:%s2417]
                %2457 = vst [vmem:[%s2425 + $0x6c] sm:%s2417] %v2456
              $region61: #{tpu_custom_call.1} parent=55 // loop_footer
                %s2423 = sadd.s32 1, %s2419
              $region62: #{tpu_custom_call.1} parent=55 // loop_footer_branch
                %2418 = sbr.rel target = $region58
              $region63: #{tpu_custom_call.1} parent=55 // loop_exit
                _
            $region56: #{tpu_custom_call.1} parent=47 // pred_fallthru
              _
          $region48: #{tpu_custom_call.1} parent=43 // pred_fallthru
            _
          %2510 = vnop
        $region44: #{tpu_custom_call.1} parent=31 // pred_fallthru
          _
        // Predicated region
        $region82: #{tpu_custom_call.1} parent=31 // pred_check
          %p2511 = pneg %p151
        $region83: #{tpu_custom_call.1} parent=31 // pred_check_branch
          %2513 = sbr.rel (%p2511) target = $region85
        $region84: #{tpu_custom_call.1} parent=31 // pred_region
          %s2514 = smul.u32 4, %s26
          %s2515 = smul.addr %s25, 32
          %s2516 = sadd.s32 %s2514, %s2515
          %s2517 = smul.addr %s2516, 4
          %s2518 = scalar_lea.vmem %s4, %s2517
          // Predicated region
          $region86: #{tpu_custom_call.1} parent=84 // pred_check
            _
          $region87: #{tpu_custom_call.1} parent=84 // pred_check_branch
            %2520 = sbr.rel (0) target = $region89
          $region88: #{tpu_custom_call.1} parent=84 // pred_region
            // Predicated region
            $region90: #{tpu_custom_call.1} parent=88 // pred_check
              _
            $region91: #{tpu_custom_call.1} parent=88 // pred_check_branch
              %2522 = sbr.rel target = $region93
            $region92: #{tpu_custom_call.1} parent=88 // pred_region
              // Predicated region
              $region105: #{tpu_custom_call.1} parent=92 // pred_check
                _
              $region106: #{tpu_custom_call.1} parent=92 // pred_check_branch
                %2568 = sbr.rel (0) target = $region108
              $region107: #{tpu_custom_call.1} parent=92 // pred_region
                loop: start=0, step=1, limit=1
                $region109: #{tpu_custom_call.1} parent=107 // loop_pre_header
                  _
                $region110: #{tpu_custom_call.1} parent=107 // loop_header
                  %s2570 = sphi 0, %s2574
                  %p2571 = scmp.ge.s32.totalorder %s2570, 1
                  %s2575 = sphi %s2397, %s2397
                  %s2576 = sphi %s2518, %s2518
                $region111: #{tpu_custom_call.1} parent=107 // loop_header_branch
                  %2573 = sbr.rel (%p2571) target = $region115
                $region112: #{tpu_custom_call.1} parent=107 // loop_body
                  _
                $region113: #{tpu_custom_call.1} parent=107 // loop_footer
                  %s2574 = sadd.s32 1, %s2570
                $region114: #{tpu_custom_call.1} parent=107 // loop_footer_branch
                  %2569 = sbr.rel target = $region110
                $region115: #{tpu_custom_call.1} parent=107 // loop_exit
                  _
                %s2578 = ssub.s32 16, 1
                loop: start=0, step=1, limit=1
                $region116: #{tpu_custom_call.1} parent=107 // loop_pre_header
                  _
                $region117: #{tpu_custom_call.1} parent=107 // loop_header
                  %s2580 = sphi 0, %s2584
                  %p2581 = scmp.ge.s32.totalorder %s2580, 1
                  %s2585 = sphi %s2397, %s2397
                  %s2586 = sphi %s2518, %s2518
                $region118: #{tpu_custom_call.1} parent=107 // loop_header_branch
                  %2583 = sbr.rel (%p2581) target = $region122
                $region119: #{tpu_custom_call.1} parent=107 // loop_body
                  %v2587 = vld [vmem:[%s2585] sm:%s2578]
                  %2588 = vst [vmem:[%s2586] sm:%s2578] %v2587
                  %v2589 = vld [vmem:[%s2585 + $0x4] sm:%s2578]
                  %2590 = vst [vmem:[%s2586 + $0x4] sm:%s2578] %v2589
                  %v2591 = vld [vmem:[%s2585 + $0x8] sm:%s2578]
                  %2592 = vst [vmem:[%s2586 + $0x8] sm:%s2578] %v2591
                  %v2593 = vld [vmem:[%s2585 + $0xc] sm:%s2578]
                  %2594 = vst [vmem:[%s2586 + $0xc] sm:%s2578] %v2593
                  %v2595 = vld [vmem:[%s2585 + $0x10] sm:%s2578]
                  %2596 = vst [vmem:[%s2586 + $0x20] sm:%s2578] %v2595
                  %v2597 = vld [vmem:[%s2585 + $0x14] sm:%s2578]
                  %2598 = vst [vmem:[%s2586 + $0x24] sm:%s2578] %v2597
                  %v2599 = vld [vmem:[%s2585 + $0x18] sm:%s2578]
                  %2600 = vst [vmem:[%s2586 + $0x28] sm:%s2578] %v2599
                  %v2601 = vld [vmem:[%s2585 + $0x1c] sm:%s2578]
                  %2602 = vst [vmem:[%s2586 + $0x2c] sm:%s2578] %v2601
                  %v2603 = vld [vmem:[%s2585 + $0x20] sm:%s2578]
                  %2604 = vst [vmem:[%s2586 + $0x40] sm:%s2578] %v2603
                  %v2605 = vld [vmem:[%s2585 + $0x24] sm:%s2578]
                  %2606 = vst [vmem:[%s2586 + $0x44] sm:%s2578] %v2605
                  %v2607 = vld [vmem:[%s2585 + $0x28] sm:%s2578]
                  %2608 = vst [vmem:[%s2586 + $0x48] sm:%s2578] %v2607
                  %v2609 = vld [vmem:[%s2585 + $0x2c] sm:%s2578]
                  %2610 = vst [vmem:[%s2586 + $0x4c] sm:%s2578] %v2609
                  %v2611 = vld [vmem:[%s2585 + $0x30] sm:%s2578]
                  %2612 = vst [vmem:[%s2586 + $0x60] sm:%s2578] %v2611
                  %v2613 = vld [vmem:[%s2585 + $0x34] sm:%s2578]
                  %2614 = vst [vmem:[%s2586 + $0x64] sm:%s2578] %v2613
                  %v2615 = vld [vmem:[%s2585 + $0x38] sm:%s2578]
                  %2616 = vst [vmem:[%s2586 + $0x68] sm:%s2578] %v2615
                  %v2617 = vld [vmem:[%s2585 + $0x3c] sm:%s2578]
                  %2618 = vst [vmem:[%s2586 + $0x6c] sm:%s2578] %v2617
                $region120: #{tpu_custom_call.1} parent=107 // loop_footer
                  %s2584 = sadd.s32 1, %s2580
                $region121: #{tpu_custom_call.1} parent=107 // loop_footer_branch
                  %2579 = sbr.rel target = $region117
                $region122: #{tpu_custom_call.1} parent=107 // loop_exit
                  _
              $region108: #{tpu_custom_call.1} parent=92 // pred_fallthru
                _
            $region93: #{tpu_custom_call.1} parent=88 // pred_fallthru
              _
            // Predicated region
            $region94: #{tpu_custom_call.1} parent=88 // pred_check
              _
            $region95: #{tpu_custom_call.1} parent=88 // pred_check_branch
              %2524 = sbr.rel (0) target = $region97
            $region96: #{tpu_custom_call.1} parent=88 // pred_region
              %s2526 = ssub.s32 16, 1
              loop: start=0, step=1, limit=1
              $region98: #{tpu_custom_call.1} parent=96 // loop_pre_header
                _
              $region99: #{tpu_custom_call.1} parent=96 // loop_header
                %s2528 = sphi 0, %s2532
                %p2529 = scmp.ge.s32.totalorder %s2528, 1
                %s2533 = sphi %s2397, %s2397
                %s2534 = sphi %s2518, %s2518
              $region100: #{tpu_custom_call.1} parent=96 // loop_header_branch
                %2531 = sbr.rel (%p2529) target = $region104
              $region101: #{tpu_custom_call.1} parent=96 // loop_body
                %v2535 = vld [vmem:[%s2533] sm:%s2526]
                %2536 = vst [vmem:[%s2534] sm:%s2526] %v2535
                %v2537 = vld [vmem:[%s2533 + $0x4] sm:%s2526]
                %2538 = vst [vmem:[%s2534 + $0x4] sm:%s2526] %v2537
                %v2539 = vld [vmem:[%s2533 + $0x8] sm:%s2526]
                %2540 = vst [vmem:[%s2534 + $0x8] sm:%s2526] %v2539
                %v2541 = vld [vmem:[%s2533 + $0xc] sm:%s2526]
                %2542 = vst [vmem:[%s2534 + $0xc] sm:%s2526] %v2541
                %v2543 = vld [vmem:[%s2533 + $0x10] sm:%s2526]
                %2544 = vst [vmem:[%s2534 + $0x20] sm:%s2526] %v2543
                %v2545 = vld [vmem:[%s2533 + $0x14] sm:%s2526]
                %2546 = vst [vmem:[%s2534 + $0x24] sm:%s2526] %v2545
                %v2547 = vld [vmem:[%s2533 + $0x18] sm:%s2526]
                %2548 = vst [vmem:[%s2534 + $0x28] sm:%s2526] %v2547
                %v2549 = vld [vmem:[%s2533 + $0x1c] sm:%s2526]
                %2550 = vst [vmem:[%s2534 + $0x2c] sm:%s2526] %v2549
                %v2551 = vld [vmem:[%s2533 + $0x20] sm:%s2526]
                %2552 = vst [vmem:[%s2534 + $0x40] sm:%s2526] %v2551
                %v2553 = vld [vmem:[%s2533 + $0x24] sm:%s2526]
                %2554 = vst [vmem:[%s2534 + $0x44] sm:%s2526] %v2553
                %v2555 = vld [vmem:[%s2533 + $0x28] sm:%s2526]
                %2556 = vst [vmem:[%s2534 + $0x48] sm:%s2526] %v2555
                %v2557 = vld [vmem:[%s2533 + $0x2c] sm:%s2526]
                %2558 = vst [vmem:[%s2534 + $0x4c] sm:%s2526] %v2557
                %v2559 = vld [vmem:[%s2533 + $0x30] sm:%s2526]
                %2560 = vst [vmem:[%s2534 + $0x60] sm:%s2526] %v2559
                %v2561 = vld [vmem:[%s2533 + $0x34] sm:%s2526]
                %2562 = vst [vmem:[%s2534 + $0x64] sm:%s2526] %v2561
                %v2563 = vld [vmem:[%s2533 + $0x38] sm:%s2526]
                %2564 = vst [vmem:[%s2534 + $0x68] sm:%s2526] %v2563
                %v2565 = vld [vmem:[%s2533 + $0x3c] sm:%s2526]
                %2566 = vst [vmem:[%s2534 + $0x6c] sm:%s2526] %v2565
              $region102: #{tpu_custom_call.1} parent=96 // loop_footer
                %s2532 = sadd.s32 1, %s2528
              $region103: #{tpu_custom_call.1} parent=96 // loop_footer_branch
                %2527 = sbr.rel target = $region99
              $region104: #{tpu_custom_call.1} parent=96 // loop_exit
                _
            $region97: #{tpu_custom_call.1} parent=88 // pred_fallthru
              _
          $region89: #{tpu_custom_call.1} parent=84 // pred_fallthru
            _
          %2619 = vnop
        $region85: #{tpu_custom_call.1} parent=31 // pred_fallthru
          _
        // Predicated region
        $region123: #{tpu_custom_call.1} parent=31 // pred_check
          %p2620 = pneg %p179
        $region124: #{tpu_custom_call.1} parent=31 // pred_check_branch
          %2622 = sbr.rel (%p2620) target = $region126
        $region125: #{tpu_custom_call.1} parent=31 // pred_region
          %s2623 = smul.u32 4, %s26
          %s2624 = smul.addr %s25, 32
          %s2625 = sadd.s32 %s2623, %s2624
          %s2626 = smul.addr %s2625, 4
          %s2627 = scalar_lea.vmem %s5, %s2626
          // Predicated region
          $region127: #{tpu_custom_call.1} parent=125 // pred_check
            _
          $region128: #{tpu_custom_call.1} parent=125 // pred_check_branch
            %2629 = sbr.rel (0) target = $region130
          $region129: #{tpu_custom_call.1} parent=125 // pred_region
            // Predicated region
            $region131: #{tpu_custom_call.1} parent=129 // pred_check
              _
            $region132: #{tpu_custom_call.1} parent=129 // pred_check_branch
              %2631 = sbr.rel target = $region134
            $region133: #{tpu_custom_call.1} parent=129 // pred_region
              // Predicated region
              $region146: #{tpu_custom_call.1} parent=133 // pred_check
                _
              $region147: #{tpu_custom_call.1} parent=133 // pred_check_branch
                %2677 = sbr.rel (0) target = $region149
              $region148: #{tpu_custom_call.1} parent=133 // pred_region
                loop: start=0, step=1, limit=1
                $region150: #{tpu_custom_call.1} parent=148 // loop_pre_header
                  _
                $region151: #{tpu_custom_call.1} parent=148 // loop_header
                  %s2679 = sphi 0, %s2683
                  %p2680 = scmp.ge.s32.totalorder %s2679, 1
                  %s2684 = sphi %s2401, %s2401
                  %s2685 = sphi %s2627, %s2627
                $region152: #{tpu_custom_call.1} parent=148 // loop_header_branch
                  %2682 = sbr.rel (%p2680) target = $region156
                $region153: #{tpu_custom_call.1} parent=148 // loop_body
                  _
                $region154: #{tpu_custom_call.1} parent=148 // loop_footer
                  %s2683 = sadd.s32 1, %s2679
                $region155: #{tpu_custom_call.1} parent=148 // loop_footer_branch
                  %2678 = sbr.rel target = $region151
                $region156: #{tpu_custom_call.1} parent=148 // loop_exit
                  _
                %s2687 = ssub.s32 16, 1
                loop: start=0, step=1, limit=1
                $region157: #{tpu_custom_call.1} parent=148 // loop_pre_header
                  _
                $region158: #{tpu_custom_call.1} parent=148 // loop_header
                  %s2689 = sphi 0, %s2693
                  %p2690 = scmp.ge.s32.totalorder %s2689, 1
                  %s2694 = sphi %s2401, %s2401
                  %s2695 = sphi %s2627, %s2627
                $region159: #{tpu_custom_call.1} parent=148 // loop_header_branch
                  %2692 = sbr.rel (%p2690) target = $region163
                $region160: #{tpu_custom_call.1} parent=148 // loop_body
                  %v2696 = vld [vmem:[%s2694] sm:%s2687]
                  %2697 = vst [vmem:[%s2695] sm:%s2687] %v2696
                  %v2698 = vld [vmem:[%s2694 + $0x4] sm:%s2687]
                  %2699 = vst [vmem:[%s2695 + $0x4] sm:%s2687] %v2698
                  %v2700 = vld [vmem:[%s2694 + $0x8] sm:%s2687]
                  %2701 = vst [vmem:[%s2695 + $0x8] sm:%s2687] %v2700
                  %v2702 = vld [vmem:[%s2694 + $0xc] sm:%s2687]
                  %2703 = vst [vmem:[%s2695 + $0xc] sm:%s2687] %v2702
                  %v2704 = vld [vmem:[%s2694 + $0x10] sm:%s2687]
                  %2705 = vst [vmem:[%s2695 + $0x20] sm:%s2687] %v2704
                  %v2706 = vld [vmem:[%s2694 + $0x14] sm:%s2687]
                  %2707 = vst [vmem:[%s2695 + $0x24] sm:%s2687] %v2706
                  %v2708 = vld [vmem:[%s2694 + $0x18] sm:%s2687]
                  %2709 = vst [vmem:[%s2695 + $0x28] sm:%s2687] %v2708
                  %v2710 = vld [vmem:[%s2694 + $0x1c] sm:%s2687]
                  %2711 = vst [vmem:[%s2695 + $0x2c] sm:%s2687] %v2710
                  %v2712 = vld [vmem:[%s2694 + $0x20] sm:%s2687]
                  %2713 = vst [vmem:[%s2695 + $0x40] sm:%s2687] %v2712
                  %v2714 = vld [vmem:[%s2694 + $0x24] sm:%s2687]
                  %2715 = vst [vmem:[%s2695 + $0x44] sm:%s2687] %v2714
                  %v2716 = vld [vmem:[%s2694 + $0x28] sm:%s2687]
                  %2717 = vst [vmem:[%s2695 + $0x48] sm:%s2687] %v2716
                  %v2718 = vld [vmem:[%s2694 + $0x2c] sm:%s2687]
                  %2719 = vst [vmem:[%s2695 + $0x4c] sm:%s2687] %v2718
                  %v2720 = vld [vmem:[%s2694 + $0x30] sm:%s2687]
                  %2721 = vst [vmem:[%s2695 + $0x60] sm:%s2687] %v2720
                  %v2722 = vld [vmem:[%s2694 + $0x34] sm:%s2687]
                  %2723 = vst [vmem:[%s2695 + $0x64] sm:%s2687] %v2722
                  %v2724 = vld [vmem:[%s2694 + $0x38] sm:%s2687]
                  %2725 = vst [vmem:[%s2695 + $0x68] sm:%s2687] %v2724
                  %v2726 = vld [vmem:[%s2694 + $0x3c] sm:%s2687]
                  %2727 = vst [vmem:[%s2695 + $0x6c] sm:%s2687] %v2726
                $region161: #{tpu_custom_call.1} parent=148 // loop_footer
                  %s2693 = sadd.s32 1, %s2689
                $region162: #{tpu_custom_call.1} parent=148 // loop_footer_branch
                  %2688 = sbr.rel target = $region158
                $region163: #{tpu_custom_call.1} parent=148 // loop_exit
                  _
              $region149: #{tpu_custom_call.1} parent=133 // pred_fallthru
                _
            $region134: #{tpu_custom_call.1} parent=129 // pred_fallthru
              _
            // Predicated region
            $region135: #{tpu_custom_call.1} parent=129 // pred_check
              _
            $region136: #{tpu_custom_call.1} parent=129 // pred_check_branch
              %2633 = sbr.rel (0) target = $region138
            $region137: #{tpu_custom_call.1} parent=129 // pred_region
              %s2635 = ssub.s32 16, 1
              loop: start=0, step=1, limit=1
              $region139: #{tpu_custom_call.1} parent=137 // loop_pre_header
                _
              $region140: #{tpu_custom_call.1} parent=137 // loop_header
                %s2637 = sphi 0, %s2641
                %p2638 = scmp.ge.s32.totalorder %s2637, 1
                %s2642 = sphi %s2401, %s2401
                %s2643 = sphi %s2627, %s2627
              $region141: #{tpu_custom_call.1} parent=137 // loop_header_branch
                %2640 = sbr.rel (%p2638) target = $region145
              $region142: #{tpu_custom_call.1} parent=137 // loop_body
                %v2644 = vld [vmem:[%s2642] sm:%s2635]
                %2645 = vst [vmem:[%s2643] sm:%s2635] %v2644
                %v2646 = vld [vmem:[%s2642 + $0x4] sm:%s2635]
                %2647 = vst [vmem:[%s2643 + $0x4] sm:%s2635] %v2646
                %v2648 = vld [vmem:[%s2642 + $0x8] sm:%s2635]
                %2649 = vst [vmem:[%s2643 + $0x8] sm:%s2635] %v2648
                %v2650 = vld [vmem:[%s2642 + $0xc] sm:%s2635]
                %2651 = vst [vmem:[%s2643 + $0xc] sm:%s2635] %v2650
                %v2652 = vld [vmem:[%s2642 + $0x10] sm:%s2635]
                %2653 = vst [vmem:[%s2643 + $0x20] sm:%s2635] %v2652
                %v2654 = vld [vmem:[%s2642 + $0x14] sm:%s2635]
                %2655 = vst [vmem:[%s2643 + $0x24] sm:%s2635] %v2654
                %v2656 = vld [vmem:[%s2642 + $0x18] sm:%s2635]
                %2657 = vst [vmem:[%s2643 + $0x28] sm:%s2635] %v2656
                %v2658 = vld [vmem:[%s2642 + $0x1c] sm:%s2635]
                %2659 = vst [vmem:[%s2643 + $0x2c] sm:%s2635] %v2658
                %v2660 = vld [vmem:[%s2642 + $0x20] sm:%s2635]
                %2661 = vst [vmem:[%s2643 + $0x40] sm:%s2635] %v2660
                %v2662 = vld [vmem:[%s2642 + $0x24] sm:%s2635]
                %2663 = vst [vmem:[%s2643 + $0x44] sm:%s2635] %v2662
                %v2664 = vld [vmem:[%s2642 + $0x28] sm:%s2635]
                %2665 = vst [vmem:[%s2643 + $0x48] sm:%s2635] %v2664
                %v2666 = vld [vmem:[%s2642 + $0x2c] sm:%s2635]
                %2667 = vst [vmem:[%s2643 + $0x4c] sm:%s2635] %v2666
                %v2668 = vld [vmem:[%s2642 + $0x30] sm:%s2635]
                %2669 = vst [vmem:[%s2643 + $0x60] sm:%s2635] %v2668
                %v2670 = vld [vmem:[%s2642 + $0x34] sm:%s2635]
                %2671 = vst [vmem:[%s2643 + $0x64] sm:%s2635] %v2670
                %v2672 = vld [vmem:[%s2642 + $0x38] sm:%s2635]
                %2673 = vst [vmem:[%s2643 + $0x68] sm:%s2635] %v2672
                %v2674 = vld [vmem:[%s2642 + $0x3c] sm:%s2635]
                %2675 = vst [vmem:[%s2643 + $0x6c] sm:%s2635] %v2674
              $region143: #{tpu_custom_call.1} parent=137 // loop_footer
                %s2641 = sadd.s32 1, %s2637
              $region144: #{tpu_custom_call.1} parent=137 // loop_footer_branch
                %2636 = sbr.rel target = $region140
              $region145: #{tpu_custom_call.1} parent=137 // loop_exit
                _
            $region138: #{tpu_custom_call.1} parent=129 // pred_fallthru
              _
          $region130: #{tpu_custom_call.1} parent=125 // pred_fallthru
            _
          %2728 = vnop
        $region126: #{tpu_custom_call.1} parent=31 // pred_fallthru
          _
      $region32: #{tpu_custom_call.1} parent=5 // pred_fallthru
        _
      %p2729 = scmp.le.s32.totalorder 2, %s16
      // Predicated region
      $region164: #{tpu_custom_call.1} parent=5 // pred_check
        %p2730 = pneg %p2729
      $region165: #{tpu_custom_call.1} parent=5 // pred_check_branch
        %2732 = sbr.rel (%p2730) target = $region167
      $region166: #{tpu_custom_call.1} parent=5 // pred_region
        %s2733 = ssub.s32 %s16, 2
        // Predicated region
        $region168: #{tpu_custom_call.1} parent=166 // pred_check
          %p2734 = pneg %p129
        $region169: #{tpu_custom_call.1} parent=166 // pred_check_branch
          %2736 = sbr.rel (%p2734) target = $region171
        $region170: #{tpu_custom_call.1} parent=166 // pred_region
          %s2737 = sand.u32 %s114, 1
          %s2738 = sand.u32 %s114, 1
          %s2739 = smul.addr %s2738, 64
          %s2740 = scalar_lea.vmem [#allocation6], %s2739
        $region171: #{tpu_custom_call.1} parent=166 // pred_fallthru
          _
        // Predicated region
        $region172: #{tpu_custom_call.1} parent=166 // pred_check
          %p2741 = pneg %p157
        $region173: #{tpu_custom_call.1} parent=166 // pred_check_branch
          %2743 = sbr.rel (%p2741) target = $region175
        $region174: #{tpu_custom_call.1} parent=166 // pred_region
          %s2744 = sand.u32 %s142, 1
          %s2745 = sand.u32 %s142, 1
          %s2746 = smul.addr %s2745, 64
          %s2747 = scalar_lea.vmem [#allocation7], %s2746
        $region175: #{tpu_custom_call.1} parent=166 // pred_fallthru
          _
        // Predicated region
        $region176: #{tpu_custom_call.1} parent=166 // pred_check
          %p2748 = pneg %p185
        $region177: #{tpu_custom_call.1} parent=166 // pred_check_branch
          %2750 = sbr.rel (%p2748) target = $region179
        $region178: #{tpu_custom_call.1} parent=166 // pred_region
          %s2751 = sand.u32 %s170, 1
          %s2752 = sand.u32 %s170, 1
          %s2753 = smul.addr %s2752, 64
          %s2754 = scalar_lea.vmem [#allocation8], %s2753
        $region179: #{tpu_custom_call.1} parent=166 // pred_fallthru
          _
      $region167: #{tpu_custom_call.1} parent=5 // pred_fallthru
        _
    $region6: #{tpu_custom_call.1} parent=1 // loop_footer
      %s20 = sadd.s32 1, %s16
    $region7: #{tpu_custom_call.1} parent=1 // loop_footer_branch
      %15 = sbr.rel target = $region3
    $region8: #{tpu_custom_call.1} parent=1 // loop_exit
      _
    %2755 = vsyncpa [#allocation3], 1
    %s2756 = scalar_lea.sflag [#allocation3], 1
    %2757 = vsyncpa %s2756, 1
    %2758 = vsyncpa [#allocation5], 1

</llo_original>
